<compile_context>
chip_gen: v7x
topology: tpu7x:2x2x1
jax: 0.10.0
libtpu: 0.0.40
codegen_flags: <defaults>
</compile_context>

<pallas_src>
import numpy as np
import jax
import jax.numpy as jnp
from jax.experimental import pallas as pl
from jax.experimental.pallas import tpu as pltpu

SIGMA = 25.0  # marginal_prob_std(t) = sqrt((sigma^(2t) - 1) / (2 ln sigma))

_ELEMENTWISE_DTYPE = jnp.bfloat16  # set to jnp.float32 on v5e (no bf16 VPU/EUP)


def _round_up(n, m):
    return ((n + m - 1) // m) * m


def _silu_act(v_f32):
    """SiLU on the elementwise dtype via a single tanh (EUP) op.

    silu(v) = v * sigmoid(v) = 0.5 * v * (1 + tanh(v / 2))
    """
    v = v_f32.astype(_ELEMENTWISE_DTYPE)
    return 0.5 * v * (1.0 + jnp.tanh(0.5 * v))


# --------------------------------------------------------------------------- #
# Kernel
# --------------------------------------------------------------------------- #

def scorenet_kernel(x_ref, t_ref, cond_ref,
                    w_gfp, gfp_phase, w_emb, b_emb,
                    w_cond, b_cond,
                    w1, b1, w2, b2, w3, b3,
                    w4_0, b4_0, w4_1, b4_1, w4_2, b4_2,
                    w4_3, b4_3, w4_4, b4_4, w4_5, b4_5,
                    o_ref, cat_ref):
    f32 = jnp.float32
    act = _ELEMENTWISE_DTYPE

    t = t_ref[...]                            # (Bt, 1)   f32
    x = x_ref[...]                            # (Bt, D)   bf16

    # --- Gaussian Fourier features: phase-folded single sin pass ------------
    # sin(2*pi*t*W + phase) directly yields [sin(2*pi*t*W) | cos(2*pi*t*W)].
    gfp = jnp.sin(t * w_gfp[...] + gfp_phase[...]).astype(jnp.bfloat16)  # (Bt, E)

    # --- embed = SiLU(Linear(gfp))  (single K=E matmul) ----------------------
    embed = _silu_act(
        jnp.dot(gfp, w_emb[...], preferred_element_type=f32) + b_emb[...])

    # --- condition branch: K = C+1 (tiny) -> VPU broadcast-FMAs, no MXU push -
    n_c = cond_ref.shape[-1]
    c_pre = b_cond[...] + cond_ref[:, 0:1] * w_cond[0:1, :]
    for k in range(1, n_c):
        c_pre = c_pre + cond_ref[:, k:k + 1] * w_cond[k:k + 1, :]
    cond = _silu_act(c_pre)

    # --- h1 = SiLU(fc1(x)) ----------------------------------------------------
    h1 = _silu_act(jnp.dot(x, w1[...], preferred_element_type=f32) + b1[...])

    # --- h2 = SiLU(fc2(cat([h1, embed, cond])))  fused via VMEM scratch -------
    H = h1.shape[-1]
    E = embed.shape[-1]
    cat_ref[:, 0:H] = h1.astype(jnp.bfloat16)
    cat_ref[:, H:H + E] = embed.astype(jnp.bfloat16)
    cat_ref[:, H + E:2 * H + E] = cond.astype(jnp.bfloat16)
    h2 = _silu_act(
        jnp.dot(cat_ref[...], w2[...], preferred_element_type=f32) + b2[...])

    # --- h3 = SiLU(fc3(h2)) ----------------------------------------------------
    h3 = _silu_act(
        jnp.dot(h2.astype(jnp.bfloat16), w3[...], preferred_element_type=f32)
        + b3[...])

    # --- fc4: 5 x (Linear + SiLU), then final Linear (lane-dense padded) -------
    h = h3
    for w_r, b_r in ((w4_0, b4_0), (w4_1, b4_1), (w4_2, b4_2),
                     (w4_3, b4_3), (w4_4, b4_4)):
        h = _silu_act(
            jnp.dot(h.astype(jnp.bfloat16), w_r[...], preferred_element_type=f32)
            + b_r[...])
    h = jnp.dot(h.astype(jnp.bfloat16), w4_5[...],
                preferred_element_type=f32) + b4_5[...]          # (Bt, n_out) f32

    # --- h / marginal_prob_std(t)  as an rsqrt multiply ------------------------
    # NOTE: like the PyTorch reference, this is inf at t == 0 (var == 0).
    log_sigma = np.float32(np.log(SIGMA))
    inv_two_log_sigma = np.float32(1.0 / (2.0 * np.log(SIGMA)))
    var = (jnp.exp((2.0 * log_sigma) * t) - 1.0) * inv_two_log_sigma  # (Bt, 1)
    o_ref[...] = (h * jax.lax.rsqrt(var)).astype(o_ref.dtype)


# --------------------------------------------------------------------------- #
# Parameters
# --------------------------------------------------------------------------- #

def make_params(key, data_dim, condition_dim, embed_dim, hidden_dim):
    """Deterministic synthetic params in the 'PyTorch-equivalent' layout."""
    E, H, D, C = embed_dim, hidden_dim, data_dim, condition_dim
    ks = iter(jax.random.split(key, 40))

    def lin(in_f, out_f):
        w = jax.random.normal(next(ks), (in_f, out_f), jnp.float32) / np.sqrt(in_f)
        b = jax.random.normal(next(ks), (out_f,), jnp.float32) * 0.01
        return w, b

    w_gfp = jax.random.normal(next(ks), (E // 2,), jnp.float32) * 30.0
    w_emb, b_emb = lin(E, E)
    w_cond, b_cond = lin(C + 1, H)
    w1, b1 = lin(D, H)
    w2, b2 = lin(2 * H + E, H)
    w3, b3 = lin(H, H)
    fc4 = tuple(lin(H, H) for _ in range(5)) + (lin(H, D),)
    return (w_gfp, w_emb, b_emb, w_cond, b_cond, w1, b1, w2, b2, w3, b3, fc4)


def prep_kernel_params(params, n_out):
    """Kernel-form params: phase-folded GFP weight, bf16 matmul weights,
    f32 VPU weights for the tiny condition branch, padded final layer."""
    (w_gfp, w_emb, b_emb, w_cond, b_cond, w1, b1, w2, b2, w3, b3, fc4) = params
    bf16 = jnp.bfloat16
    e_half = w_gfp.shape[0]
    two_pi = np.float32(2.0 * np.pi)

    def b2d(b):
        return b.reshape(1, -1).astype(jnp.float32)

    # sin(t * w_gfp_full + phase) == [sin(2*pi*t*W) | cos(2*pi*t*W)]
    w_gfp_full = (jnp.concatenate([w_gfp, w_gfp]).astype(jnp.float32)
                  .reshape(1, -1) * two_pi)
    gfp_phase = jnp.concatenate(
        [jnp.zeros((e_half,), jnp.float32),
         jnp.full((e_half,), np.float32(np.pi / 2.0))]).reshape(1, -1)

    out = [
        w_gfp_full, gfp_phase,
        w_emb.astype(bf16), b2d(b_emb),
        w_cond.astype(jnp.float32), b2d(b_cond),   # tiny; stays f32 for VPU FMAs
        w1.astype(bf16), b2d(b1),
        w2.astype(bf16), b2d(b2),
        w3.astype(bf16), b2d(b3),
    ]
    for w_l, b_l in fc4[:-1]:
        out += [w_l.astype(bf16), b2d(b_l)]
    w_last, b_last = fc4[-1]
    H, D = w_last.shape
    w_pad = jnp.zeros((H, n_out), jnp.float32).at[:, :D].set(w_last).astype(bf16)
    b_pad = jnp.zeros((1, n_out), jnp.float32).at[:, :D].set(b_last.reshape(1, -1))
    out += [w_pad, b_pad]
    return tuple(out)


# --------------------------------------------------------------------------- #
# Wrapper (prepare weights once, reuse the returned forward fn)
# --------------------------------------------------------------------------- #

def make_scorenet_fn(params, condition_dim, *, out_dtype=jnp.bfloat16,
                     b_tile=None, vmem_limit_bytes=None):
    (_, w_emb, _, _, _, w1, _, _, _, _, _, fc4) = params
    E = w_emb.shape[0]
    H = w1.shape[1]
    D_in = w1.shape[0]
    D_out = fc4[-1][0].shape[1]
    C = condition_dim
    n_out = max(128, _round_up(D_out, 128))          # lane-dense output width

    kparams = prep_kernel_params(params, n_out)
    weight_bytes = sum(int(np.prod(p.shape)) * p.dtype.itemsize for p in kparams)
    out_itemsize = jnp.dtype(out_dtype).itemsize

    def forward(x, t, condition=None):
        B = x.shape[0]

        # Conditioning input (matches the torch.cat semantics); tiny, keep f32.
        if condition is not None:
            cond_in = jnp.concatenate(
                [jnp.zeros((B, 1), jnp.float32), condition.astype(jnp.float32)],
                axis=-1)
        else:
            cond_in = jnp.concatenate(
                [jnp.ones((B, 1), jnp.float32), jnp.zeros((B, C), jnp.float32)],
                axis=-1)

        # Batch tile: aim for >=2 grid steps (v7x megacore), cap at 2048 rows
        # (fits v7x's 64 MiB VMEM with bf16 intermediates; v5e/v6e have slack).
        if b_tile is None:
            bt = max(8, _round_up(-(-B // 2), 8))
            bt = min(bt, 2048)
        else:
            bt = max(8, _round_up(b_tile, 8))
        b_pad = _round_up(B, bt)
        n_tiles = b_pad // bt

        def pad_rows(a, value=0.0):
            if b_pad == B:
                return a
            return jnp.pad(a, ((0, b_pad - B), (0, 0)), constant_values=value)

        x_p = pad_rows(x.astype(jnp.bfloat16))
        t_p = pad_rows(t.reshape(B, 1).astype(jnp.float32), value=1.0)  # finite pad rows
        c_p = pad_rows(cond_in)

        # Scoped-VMEM budget: double-buffered activation/output blocks, cat
        # scratch, resident weights, plus a generous f32 live-temp allowance.
        if vmem_limit_bytes is None:
            est = (2 * bt * (2 * D_in + 4 + 4 * (C + 1))        # x / t / cond blocks
                   + 2 * bt * n_out * out_itemsize              # output blocks
                   + bt * (2 * H + E) * 2                       # cat scratch (bf16)
                   + 2 * weight_bytes                           # resident weights
                   + 10 * bt * max(H, E, n_out) * 4             # live temporaries
                   + (4 << 20))                                 # slack
            vlim = int(min(max(est, 32 << 20), 56 << 20))
        else:
            vlim = int(vmem_limit_bytes)

        act_specs = [
            pl.BlockSpec((bt, D_in), lambda i: (i, 0)),
            pl.BlockSpec((bt, 1), lambda i: (i, 0)),
            pl.BlockSpec((bt, C + 1), lambda i: (i, 0)),
        ]
        # Weights/biases: constant index_map -> fetched once, resident across tiles.
        weight_specs = [pl.BlockSpec(p.shape, lambda i: (0, 0)) for p in kparams]

        out = pl.pallas_call(
            scorenet_kernel,
            out_shape=jax.ShapeDtypeStruct((b_pad, n_out), out_dtype),
            grid_spec=pltpu.PrefetchScalarGridSpec(
                num_scalar_prefetch=0,
                grid=(n_tiles,),
                in_specs=act_specs + weight_specs,
                out_specs=pl.BlockSpec((bt, n_out), lambda i: (i, 0)),
                scratch_shapes=[pltpu.VMEM((bt, 2 * H + E), jnp.bfloat16)],
            ),
            compiler_params=pltpu.CompilerParams(
                dimension_semantics=("parallel",),
                vmem_limit_bytes=vlim),
        )(x_p, t_p, c_p, *kparams)

        return out[:B, :D_out]

    return jax.jit(forward)


# --------------------------------------------------------------------------- #
# Pure-JAX reference (mirrors the PyTorch forward)
# --------------------------------------------------------------------------- #

def scorenet_reference(x, t, condition, params, condition_dim,
                       matmul_dtype=jnp.float32, act_dtype=jnp.float32):
    (w_gfp, w_emb, b_emb, w_cond, b_cond, w1, b1, w2, b2, w3, b3, fc4) = params

    def dot(a, w):
        return jnp.dot(a.astype(matmul_dtype), w.astype(matmul_dtype),
                       preferred_element_type=jnp.float32)

    def silu(v):
        return (v * jax.nn.sigmoid(v)).astype(act_dtype).astype(jnp.float32)

    B = x.shape[0]
    t2 = t.reshape(B, 1).astype(jnp.float32)
    x_proj = t2 * w_gfp.reshape(1, -1) * (2.0 * np.pi)
    gfp = jnp.concatenate([jnp.sin(x_proj), jnp.cos(x_proj)], axis=-1)
    embed = silu(dot(gfp, w_emb) + b_emb)

    if condition is not None:
        cond_in = jnp.concatenate(
            [jnp.zeros((B, 1), jnp.float32), condition.astype(jnp.float32)], axis=-1)
    else:
        cond_in = jnp.concatenate(
            [jnp.ones((B, 1), jnp.float32),
             jnp.zeros((B, condition_dim), jnp.float32)], axis=-1)
    cond = silu(dot(cond_in, w_cond) + b_cond)

    h1 = silu(dot(x.astype(jnp.float32), w1) + b1)
    h2 = silu(dot(jnp.concatenate([h1, embed, cond], axis=-1), w2) + b2)
    h3 = silu(dot(h2, w3) + b3)
    h = h3
    for w_l, b_l in fc4[:-1]:
        h = silu(dot(h, w_l) + b_l)
    w_last, b_last = fc4[-1]
    h = dot(h, w_last) + b_last

    std = jnp.sqrt((SIGMA ** (2.0 * t2) - 1.0) / (2.0 * np.log(SIGMA)))
    return h / std


if __name__ == "__main__":
    # Small shapes consistent with the module (scaled-down embed/hidden dims).
    B, DATA_DIM, COND_DIM, EMBED_DIM, HIDDEN_DIM = 8, 32, 2, 128, 128

    root = jax.random.PRNGKey(0)
    k_p, k_x, k_t, k_c = jax.random.split(root, 4)

    params = make_params(k_p, DATA_DIM, COND_DIM, EMBED_DIM, HIDDEN_DIM)
    x = jax.random.normal(k_x, (B, DATA_DIM), jnp.float32)
    t = jax.random.uniform(k_t, (B,), jnp.float32, minval=0.05, maxval=1.0)
    condition = jax.random.normal(k_c, (B, COND_DIM), jnp.float32)

    scorenet = make_scorenet_fn(params, COND_DIM)   # weights prepared once

    # Conditioned path.
    out = jax.block_until_ready(scorenet(x, t, condition))
    out_f32 = np.asarray(out.astype(jnp.float32))

    # Reference mirroring the kernel numerics (bf16 matmuls + bf16 activations).
    ref_mimic = scorenet_reference(x, t, condition, params, COND_DIM,
                                   matmul_dtype=jnp.bfloat16,
                                   act_dtype=jnp.bfloat16)
    np.testing.assert_allclose(out_f32, np.asarray(ref_mimic), rtol=3e-2, atol=3e-2)

    # Sanity vs full-f32 reference (norm-relative; bf16 limits precision).
    ref_f32 = scorenet_reference(x, t, condition, params, COND_DIM)
    rel = (np.linalg.norm(out_f32 - np.asarray(ref_f32))
           / np.linalg.norm(np.asarray(ref_f32)))
    assert rel < 0.1, f"relative L2 error vs f32 reference too large: {rel}"

    # Unconditioned path.
    out_nc = jax.block_until_ready(scorenet(x, t, None))
    ref_nc = scorenet_reference(x, t, None, params, COND_DIM,
                                matmul_dtype=jnp.bfloat16, act_dtype=jnp.bfloat16)
    np.testing.assert_allclose(np.asarray(out_nc.astype(jnp.float32)),
                               np.asarray(ref_nc), rtol=3e-2, atol=3e-2)

    print("KERNEL_OK")
</pallas_src>

<mosaic_0001>
module attributes {stable_mosaic.version = 11 : i64} {
  func.func @scorenet_kernel(%arg0: i32, %arg1: memref<8x32xbf16, #tpu.memory_space<vmem>>, %arg2: memref<8x1xf32, #tpu.memory_space<vmem>>, %arg3: memref<8x3xf32, #tpu.memory_space<vmem>>, %arg4: memref<1x128xf32, #tpu.memory_space<vmem>>, %arg5: memref<1x128xf32, #tpu.memory_space<vmem>>, %arg6: memref<128x128xbf16, #tpu.memory_space<vmem>>, %arg7: memref<1x128xf32, #tpu.memory_space<vmem>>, %arg8: memref<3x128xf32, #tpu.memory_space<vmem>>, %arg9: memref<1x128xf32, #tpu.memory_space<vmem>>, %arg10: memref<32x128xbf16, #tpu.memory_space<vmem>>, %arg11: memref<1x128xf32, #tpu.memory_space<vmem>>, %arg12: memref<384x128xbf16, #tpu.memory_space<vmem>>, %arg13: memref<1x128xf32, #tpu.memory_space<vmem>>, %arg14: memref<128x128xbf16, #tpu.memory_space<vmem>>, %arg15: memref<1x128xf32, #tpu.memory_space<vmem>>, %arg16: memref<128x128xbf16, #tpu.memory_space<vmem>>, %arg17: memref<1x128xf32, #tpu.memory_space<vmem>>, %arg18: memref<128x128xbf16, #tpu.memory_space<vmem>>, %arg19: memref<1x128xf32, #tpu.memory_space<vmem>>, %arg20: memref<128x128xbf16, #tpu.memory_space<vmem>>, %arg21: memref<1x128xf32, #tpu.memory_space<vmem>>, %arg22: memref<128x128xbf16, #tpu.memory_space<vmem>>, %arg23: memref<1x128xf32, #tpu.memory_space<vmem>>, %arg24: memref<128x128xbf16, #tpu.memory_space<vmem>>, %arg25: memref<1x128xf32, #tpu.memory_space<vmem>>, %arg26: memref<128x128xbf16, #tpu.memory_space<vmem>>, %arg27: memref<1x128xf32, #tpu.memory_space<vmem>>, %arg28: memref<8x128xbf16, #tpu.memory_space<vmem>>, %arg29: memref<8x384xbf16, #tpu.memory_space<vmem>>) attributes {dimension_semantics = [#tpu.dimension_semantics<parallel>], iteration_bounds = array<i64: 1>, scalar_prefetch = 0 : i64, scratch_operands = 1 : i64, tpu.core_type = #tpu.core_type<tc>, window_params = [{transform_indices = @transform_0, window_bounds = array<i64: 8, 32>}, {transform_indices = @transform_1, window_bounds = array<i64: 8, 1>}, {transform_indices = @transform_2, window_bounds = array<i64: 8, 3>}, {pipeline_mode = #tpu.pipeline_mode<synchronous>, transform_indices = @transform_3, window_bounds = array<i64: 1, 128>}, {pipeline_mode = #tpu.pipeline_mode<synchronous>, transform_indices = @transform_4, window_bounds = array<i64: 1, 128>}, {pipeline_mode = #tpu.pipeline_mode<synchronous>, transform_indices = @transform_5, window_bounds = array<i64: 128, 128>}, {pipeline_mode = #tpu.pipeline_mode<synchronous>, transform_indices = @transform_6, window_bounds = array<i64: 1, 128>}, {pipeline_mode = #tpu.pipeline_mode<synchronous>, transform_indices = @transform_7, window_bounds = array<i64: 3, 128>}, {pipeline_mode = #tpu.pipeline_mode<synchronous>, transform_indices = @transform_8, window_bounds = array<i64: 1, 128>}, {pipeline_mode = #tpu.pipeline_mode<synchronous>, transform_indices = @transform_9, window_bounds = array<i64: 32, 128>}, {pipeline_mode = #tpu.pipeline_mode<synchronous>, transform_indices = @transform_10, window_bounds = array<i64: 1, 128>}, {pipeline_mode = #tpu.pipeline_mode<synchronous>, transform_indices = @transform_11, window_bounds = array<i64: 384, 128>}, {pipeline_mode = #tpu.pipeline_mode<synchronous>, transform_indices = @transform_12, window_bounds = array<i64: 1, 128>}, {pipeline_mode = #tpu.pipeline_mode<synchronous>, transform_indices = @transform_13, window_bounds = array<i64: 128, 128>}, {pipeline_mode = #tpu.pipeline_mode<synchronous>, transform_indices = @transform_14, window_bounds = array<i64: 1, 128>}, {pipeline_mode = #tpu.pipeline_mode<synchronous>, transform_indices = @transform_15, window_bounds = array<i64: 128, 128>}, {pipeline_mode = #tpu.pipeline_mode<synchronous>, transform_indices = @transform_16, window_bounds = array<i64: 1, 128>}, {pipeline_mode = #tpu.pipeline_mode<synchronous>, transform_indices = @transform_17, window_bounds = array<i64: 128, 128>}, {pipeline_mode = #tpu.pipeline_mode<synchronous>, transform_indices = @transform_18, window_bounds = array<i64: 1, 128>}, {pipeline_mode = #tpu.pipeline_mode<synchronous>, transform_indices = @transform_19, window_bounds = array<i64: 128, 128>}, {pipeline_mode = #tpu.pipeline_mode<synchronous>, transform_indices = @transform_20, window_bounds = array<i64: 1, 128>}, {pipeline_mode = #tpu.pipeline_mode<synchronous>, transform_indices = @transform_21, window_bounds = array<i64: 128, 128>}, {pipeline_mode = #tpu.pipeline_mode<synchronous>, transform_indices = @transform_22, window_bounds = array<i64: 1, 128>}, {pipeline_mode = #tpu.pipeline_mode<synchronous>, transform_indices = @transform_23, window_bounds = array<i64: 128, 128>}, {pipeline_mode = #tpu.pipeline_mode<synchronous>, transform_indices = @transform_24, window_bounds = array<i64: 1, 128>}, {pipeline_mode = #tpu.pipeline_mode<synchronous>, transform_indices = @transform_25, window_bounds = array<i64: 128, 128>}, {pipeline_mode = #tpu.pipeline_mode<synchronous>, transform_indices = @transform_26, window_bounds = array<i64: 1, 128>}, {transform_indices = @transform_27, window_bounds = array<i64: 8, 128>}]} {
    %c0 = arith.constant 0 : index
    %c0_0 = arith.constant 0 : index
    %0 = vector.load %arg2[%c0, %c0_0] : memref<8x1xf32, #tpu.memory_space<vmem>>, vector<8x1xf32>
    %c0_1 = arith.constant 0 : index
    %c0_2 = arith.constant 0 : index
    %1 = vector.load %arg1[%c0_1, %c0_2] : memref<8x32xbf16, #tpu.memory_space<vmem>>, vector<8x32xbf16>
    %c0_3 = arith.constant 0 : index
    %c0_4 = arith.constant 0 : index
    %2 = vector.load %arg4[%c0_3, %c0_4] : memref<1x128xf32, #tpu.memory_space<vmem>>, vector<1x128xf32>
    %3 = vector.broadcast %0 : vector<8x1xf32> to vector<8x128xf32>
    %4 = vector.broadcast %2 : vector<1x128xf32> to vector<8x128xf32>
    %5 = arith.mulf %3, %4 : vector<8x128xf32>
    %c0_5 = arith.constant 0 : index
    %c0_6 = arith.constant 0 : index
    %6 = vector.load %arg5[%c0_5, %c0_6] : memref<1x128xf32, #tpu.memory_space<vmem>>, vector<1x128xf32>
    %7 = vector.broadcast %6 : vector<1x128xf32> to vector<8x128xf32>
    %8 = arith.addf %5, %7 : vector<8x128xf32>
    %9 = math.sin %8 : vector<8x128xf32>
    %10 = arith.truncf %9 : vector<8x128xf32> to vector<8x128xbf16>
    %c0_7 = arith.constant 0 : index
    %c0_8 = arith.constant 0 : index
    %11 = vector.load %arg6[%c0_7, %c0_8] : memref<128x128xbf16, #tpu.memory_space<vmem>>, vector<128x128xbf16>
    %cst = arith.constant dense<0.000000e+00> : vector<8x128xf32>
    %12 = tpu.matmul %10, %11, %cst {dimension_numbers = #tpu.dot_dimension_numbers<[1], [0], [0], [1], [0, 0, 1, 1], [], []>} : vector<8x128xbf16>, vector<128x128xbf16>, vector<8x128xf32> -> vector<8x128xf32>
    %c0_9 = arith.constant 0 : index
    %c0_10 = arith.constant 0 : index
    %13 = vector.load %arg7[%c0_9, %c0_10] : memref<1x128xf32, #tpu.memory_space<vmem>>, vector<1x128xf32>
    %14 = vector.broadcast %13 : vector<1x128xf32> to vector<8x128xf32>
    %15 = arith.addf %12, %14 : vector<8x128xf32>
    %16 = arith.truncf %15 : vector<8x128xf32> to vector<8x128xbf16>
    %cst_11 = arith.constant 5.000000e-01 : bf16
    %17 = vector.broadcast %cst_11 : bf16 to vector<8x128xbf16>
    %18 = arith.mulf %17, %16 : vector<8x128xbf16>
    %cst_12 = arith.constant 5.000000e-01 : bf16
    %19 = vector.broadcast %cst_12 : bf16 to vector<8x128xbf16>
    %20 = arith.mulf %19, %16 : vector<8x128xbf16>
    %21 = math.tanh %20 : vector<8x128xbf16>
    %cst_13 = arith.constant 1.000000e+00 : bf16
    %22 = vector.broadcast %cst_13 : bf16 to vector<8x128xbf16>
    %23 = arith.addf %22, %21 : vector<8x128xbf16>
    %24 = arith.mulf %18, %23 : vector<8x128xbf16>
    %c0_14 = arith.constant 0 : index
    %c0_15 = arith.constant 0 : index
    %25 = vector.load %arg9[%c0_14, %c0_15] : memref<1x128xf32, #tpu.memory_space<vmem>>, vector<1x128xf32>
    %c0_16 = arith.constant 0 : index
    %c0_17 = arith.constant 0 : index
    %26 = vector.load %arg3[%c0_16, %c0_17] : memref<8x3xf32, #tpu.memory_space<vmem>>, vector<8x1xf32>
    %c0_18 = arith.constant 0 : index
    %c0_19 = arith.constant 0 : index
    %27 = vector.load %arg8[%c0_18, %c0_19] : memref<3x128xf32, #tpu.memory_space<vmem>>, vector<1x128xf32>
    %28 = vector.broadcast %26 : vector<8x1xf32> to vector<8x128xf32>
    %29 = vector.broadcast %27 : vector<1x128xf32> to vector<8x128xf32>
    %30 = arith.mulf %28, %29 : vector<8x128xf32>
    %31 = vector.broadcast %25 : vector<1x128xf32> to vector<8x128xf32>
    %32 = arith.addf %31, %30 : vector<8x128xf32>
    %c0_20 = arith.constant 0 : index
    %c1 = arith.constant 1 : index
    %33 = vector.load %arg3[%c0_20, %c1] : memref<8x3xf32, #tpu.memory_space<vmem>>, vector<8x1xf32>
    %c1_21 = arith.constant 1 : index
    %c0_22 = arith.constant 0 : index
    %34 = vector.load %arg8[%c1_21, %c0_22] : memref<3x128xf32, #tpu.memory_space<vmem>>, vector<1x128xf32>
    %35 = vector.broadcast %33 : vector<8x1xf32> to vector<8x128xf32>
    %36 = vector.broadcast %34 : vector<1x128xf32> to vector<8x128xf32>
    %37 = arith.mulf %35, %36 : vector<8x128xf32>
    %38 = arith.addf %32, %37 : vector<8x128xf32>
    %c0_23 = arith.constant 0 : index
    %c2 = arith.constant 2 : index
    %39 = vector.load %arg3[%c0_23, %c2] : memref<8x3xf32, #tpu.memory_space<vmem>>, vector<8x1xf32>
    %c2_24 = arith.constant 2 : index
    %c0_25 = arith.constant 0 : index
    %40 = vector.load %arg8[%c2_24, %c0_25] : memref<3x128xf32, #tpu.memory_space<vmem>>, vector<1x128xf32>
    %41 = vector.broadcast %39 : vector<8x1xf32> to vector<8x128xf32>
    %42 = vector.broadcast %40 : vector<1x128xf32> to vector<8x128xf32>
    %43 = arith.mulf %41, %42 : vector<8x128xf32>
    %44 = arith.addf %38, %43 : vector<8x128xf32>
    %45 = arith.truncf %44 : vector<8x128xf32> to vector<8x128xbf16>
    %cst_26 = arith.constant 5.000000e-01 : bf16
    %46 = vector.broadcast %cst_26 : bf16 to vector<8x128xbf16>
    %47 = arith.mulf %46, %45 : vector<8x128xbf16>
    %cst_27 = arith.constant 5.000000e-01 : bf16
    %48 = vector.broadcast %cst_27 : bf16 to vector<8x128xbf16>
    %49 = arith.mulf %48, %45 : vector<8x128xbf16>
    %50 = math.tanh %49 : vector<8x128xbf16>
    %cst_28 = arith.constant 1.000000e+00 : bf16
    %51 = vector.broadcast %cst_28 : bf16 to vector<8x128xbf16>
    %52 = arith.addf %51, %50 : vector<8x128xbf16>
    %53 = arith.mulf %47, %52 : vector<8x128xbf16>
    %c0_29 = arith.constant 0 : index
    %c0_30 = arith.constant 0 : index
    %54 = vector.load %arg10[%c0_29, %c0_30] : memref<32x128xbf16, #tpu.memory_space<vmem>>, vector<32x128xbf16>
    %cst_31 = arith.constant dense<0.000000e+00> : vector<8x128xf32>
    %55 = tpu.matmul %1, %54, %cst_31 {dimension_numbers = #tpu.dot_dimension_numbers<[1], [0], [0], [1], [0, 0, 1, 1], [], []>} : vector<8x32xbf16>, vector<32x128xbf16>, vector<8x128xf32> -> vector<8x128xf32>
    %c0_32 = arith.constant 0 : index
    %c0_33 = arith.constant 0 : index
    %56 = vector.load %arg11[%c0_32, %c0_33] : memref<1x128xf32, #tpu.memory_space<vmem>>, vector<1x128xf32>
    %57 = vector.broadcast %56 : vector<1x128xf32> to vector<8x128xf32>
    %58 = arith.addf %55, %57 : vector<8x128xf32>
    %59 = arith.truncf %58 : vector<8x128xf32> to vector<8x128xbf16>
    %cst_34 = arith.constant 5.000000e-01 : bf16
    %60 = vector.broadcast %cst_34 : bf16 to vector<8x128xbf16>
    %61 = arith.mulf %60, %59 : vector<8x128xbf16>
    %cst_35 = arith.constant 5.000000e-01 : bf16
    %62 = vector.broadcast %cst_35 : bf16 to vector<8x128xbf16>
    %63 = arith.mulf %62, %59 : vector<8x128xbf16>
    %64 = math.tanh %63 : vector<8x128xbf16>
    %cst_36 = arith.constant 1.000000e+00 : bf16
    %65 = vector.broadcast %cst_36 : bf16 to vector<8x128xbf16>
    %66 = arith.addf %65, %64 : vector<8x128xbf16>
    %67 = arith.mulf %61, %66 : vector<8x128xbf16>
    %c0_37 = arith.constant 0 : index
    %c0_38 = arith.constant 0 : index
    %68 = vector.load %arg29[%c0_37, %c0_38] : memref<8x384xbf16, #tpu.memory_space<vmem>>, vector<8x128xbf16>
    tpu.vector_store %arg29[%c0_37, %c0_38], %67 {strides = array<i32>} : memref<8x384xbf16, #tpu.memory_space<vmem>>, vector<8x128xbf16>,
    %c0_39 = arith.constant 0 : index
    %c128 = arith.constant 128 : index
    %69 = vector.load %arg29[%c0_39, %c128] : memref<8x384xbf16, #tpu.memory_space<vmem>>, vector<8x128xbf16>
    tpu.vector_store %arg29[%c0_39, %c128], %24 {strides = array<i32>} : memref<8x384xbf16, #tpu.memory_space<vmem>>, vector<8x128xbf16>,
    %c0_40 = arith.constant 0 : index
    %c256 = arith.constant 256 : index
    %70 = vector.load %arg29[%c0_40, %c256] : memref<8x384xbf16, #tpu.memory_space<vmem>>, vector<8x128xbf16>
    tpu.vector_store %arg29[%c0_40, %c256], %53 {strides = array<i32>} : memref<8x384xbf16, #tpu.memory_space<vmem>>, vector<8x128xbf16>,
    %c0_41 = arith.constant 0 : index
    %c0_42 = arith.constant 0 : index
    %71 = vector.load %arg29[%c0_41, %c0_42] : memref<8x384xbf16, #tpu.memory_space<vmem>>, vector<8x384xbf16>
    %c0_43 = arith.constant 0 : index
    %c0_44 = arith.constant 0 : index
    %72 = vector.load %arg12[%c0_43, %c0_44] : memref<384x128xbf16, #tpu.memory_space<vmem>>, vector<384x128xbf16>
    %cst_45 = arith.constant dense<0.000000e+00> : vector<8x128xf32>
    %73 = tpu.matmul %71, %72, %cst_45 {dimension_numbers = #tpu.dot_dimension_numbers<[1], [0], [0], [1], [0, 0, 1, 1], [], []>} : vector<8x384xbf16>, vector<384x128xbf16>, vector<8x128xf32> -> vector<8x128xf32>
    %c0_46 = arith.constant 0 : index
    %c0_47 = arith.constant 0 : index
    %74 = vector.load %arg13[%c0_46, %c0_47] : memref<1x128xf32, #tpu.memory_space<vmem>>, vector<1x128xf32>
    %75 = vector.broadcast %74 : vector<1x128xf32> to vector<8x128xf32>
    %76 = arith.addf %73, %75 : vector<8x128xf32>
    %77 = arith.truncf %76 : vector<8x128xf32> to vector<8x128xbf16>
    %cst_48 = arith.constant 5.000000e-01 : bf16
    %78 = vector.broadcast %cst_48 : bf16 to vector<8x128xbf16>
    %79 = arith.mulf %78, %77 : vector<8x128xbf16>
    %cst_49 = arith.constant 5.000000e-01 : bf16
    %80 = vector.broadcast %cst_49 : bf16 to vector<8x128xbf16>
    %81 = arith.mulf %80, %77 : vector<8x128xbf16>
    %82 = math.tanh %81 : vector<8x128xbf16>
    %cst_50 = arith.constant 1.000000e+00 : bf16
    %83 = vector.broadcast %cst_50 : bf16 to vector<8x128xbf16>
    %84 = arith.addf %83, %82 : vector<8x128xbf16>
    %85 = arith.mulf %79, %84 : vector<8x128xbf16>
    %c0_51 = arith.constant 0 : index
    %c0_52 = arith.constant 0 : index
    %86 = vector.load %arg14[%c0_51, %c0_52] : memref<128x128xbf16, #tpu.memory_space<vmem>>, vector<128x128xbf16>
    %cst_53 = arith.constant dense<0.000000e+00> : vector<8x128xf32>
    %87 = tpu.matmul %85, %86, %cst_53 {dimension_numbers = #tpu.dot_dimension_numbers<[1], [0], [0], [1], [0, 0, 1, 1], [], []>} : vector<8x128xbf16>, vector<128x128xbf16>, vector<8x128xf32> -> vector<8x128xf32>
    %c0_54 = arith.constant 0 : index
    %c0_55 = arith.constant 0 : index
    %88 = vector.load %arg15[%c0_54, %c0_55] : memref<1x128xf32, #tpu.memory_space<vmem>>, vector<1x128xf32>
    %89 = vector.broadcast %88 : vector<1x128xf32> to vector<8x128xf32>
    %90 = arith.addf %87, %89 : vector<8x128xf32>
    %91 = arith.truncf %90 : vector<8x128xf32> to vector<8x128xbf16>
    %cst_56 = arith.constant 5.000000e-01 : bf16
    %92 = vector.broadcast %cst_56 : bf16 to vector<8x128xbf16>
    %93 = arith.mulf %92, %91 : vector<8x128xbf16>
    %cst_57 = arith.constant 5.000000e-01 : bf16
    %94 = vector.broadcast %cst_57 : bf16 to vector<8x128xbf16>
    %95 = arith.mulf %94, %91 : vector<8x128xbf16>
    %96 = math.tanh %95 : vector<8x128xbf16>
    %cst_58 = arith.constant 1.000000e+00 : bf16
    %97 = vector.broadcast %cst_58 : bf16 to vector<8x128xbf16>
    %98 = arith.addf %97, %96 : vector<8x128xbf16>
    %99 = arith.mulf %93, %98 : vector<8x128xbf16>
    %c0_59 = arith.constant 0 : index
    %c0_60 = arith.constant 0 : index
    %100 = vector.load %arg16[%c0_59, %c0_60] : memref<128x128xbf16, #tpu.memory_space<vmem>>, vector<128x128xbf16>
    %cst_61 = arith.constant dense<0.000000e+00> : vector<8x128xf32>
    %101 = tpu.matmul %99, %100, %cst_61 {dimension_numbers = #tpu.dot_dimension_numbers<[1], [0], [0], [1], [0, 0, 1, 1], [], []>} : vector<8x128xbf16>, vector<128x128xbf16>, vector<8x128xf32> -> vector<8x128xf32>
    %c0_62 = arith.constant 0 : index
    %c0_63 = arith.constant 0 : index
    %102 = vector.load %arg17[%c0_62, %c0_63] : memref<1x128xf32, #tpu.memory_space<vmem>>, vector<1x128xf32>
    %103 = vector.broadcast %102 : vector<1x128xf32> to vector<8x128xf32>
    %104 = arith.addf %101, %103 : vector<8x128xf32>
    %105 = arith.truncf %104 : vector<8x128xf32> to vector<8x128xbf16>
    %cst_64 = arith.constant 5.000000e-01 : bf16
    %106 = vector.broadcast %cst_64 : bf16 to vector<8x128xbf16>
    %107 = arith.mulf %106, %105 : vector<8x128xbf16>
    %cst_65 = arith.constant 5.000000e-01 : bf16
    %108 = vector.broadcast %cst_65 : bf16 to vector<8x128xbf16>
    %109 = arith.mulf %108, %105 : vector<8x128xbf16>
    %110 = math.tanh %109 : vector<8x128xbf16>
    %cst_66 = arith.constant 1.000000e+00 : bf16
    %111 = vector.broadcast %cst_66 : bf16 to vector<8x128xbf16>
    %112 = arith.addf %111, %110 : vector<8x128xbf16>
    %113 = arith.mulf %107, %112 : vector<8x128xbf16>
    %c0_67 = arith.constant 0 : index
    %c0_68 = arith.constant 0 : index
    %114 = vector.load %arg18[%c0_67, %c0_68] : memref<128x128xbf16, #tpu.memory_space<vmem>>, vector<128x128xbf16>
    %cst_69 = arith.constant dense<0.000000e+00> : vector<8x128xf32>
    %115 = tpu.matmul %113, %114, %cst_69 {dimension_numbers = #tpu.dot_dimension_numbers<[1], [0], [0], [1], [0, 0, 1, 1], [], []>} : vector<8x128xbf16>, vector<128x128xbf16>, vector<8x128xf32> -> vector<8x128xf32>
    %c0_70 = arith.constant 0 : index
    %c0_71 = arith.constant 0 : index
    %116 = vector.load %arg19[%c0_70, %c0_71] : memref<1x128xf32, #tpu.memory_space<vmem>>, vector<1x128xf32>
    %117 = vector.broadcast %116 : vector<1x128xf32> to vector<8x128xf32>
    %118 = arith.addf %115, %117 : vector<8x128xf32>
    %119 = arith.truncf %118 : vector<8x128xf32> to vector<8x128xbf16>
    %cst_72 = arith.constant 5.000000e-01 : bf16
    %120 = vector.broadcast %cst_72 : bf16 to vector<8x128xbf16>
    %121 = arith.mulf %120, %119 : vector<8x128xbf16>
    %cst_73 = arith.constant 5.000000e-01 : bf16
    %122 = vector.broadcast %cst_73 : bf16 to vector<8x128xbf16>
    %123 = arith.mulf %122, %119 : vector<8x128xbf16>
    %124 = math.tanh %123 : vector<8x128xbf16>
    %cst_74 = arith.constant 1.000000e+00 : bf16
    %125 = vector.broadcast %cst_74 : bf16 to vector<8x128xbf16>
    %126 = arith.addf %125, %124 : vector<8x128xbf16>
    %127 = arith.mulf %121, %126 : vector<8x128xbf16>
    %c0_75 = arith.constant 0 : index
    %c0_76 = arith.constant 0 : index
    %128 = vector.load %arg20[%c0_75, %c0_76] : memref<128x128xbf16, #tpu.memory_space<vmem>>, vector<128x128xbf16>
    %cst_77 = arith.constant dense<0.000000e+00> : vector<8x128xf32>
    %129 = tpu.matmul %127, %128, %cst_77 {dimension_numbers = #tpu.dot_dimension_numbers<[1], [0], [0], [1], [0, 0, 1, 1], [], []>} : vector<8x128xbf16>, vector<128x128xbf16>, vector<8x128xf32> -> vector<8x128xf32>
    %c0_78 = arith.constant 0 : index
    %c0_79 = arith.constant 0 : index
    %130 = vector.load %arg21[%c0_78, %c0_79] : memref<1x128xf32, #tpu.memory_space<vmem>>, vector<1x128xf32>
    %131 = vector.broadcast %130 : vector<1x128xf32> to vector<8x128xf32>
    %132 = arith.addf %129, %131 : vector<8x128xf32>
    %133 = arith.truncf %132 : vector<8x128xf32> to vector<8x128xbf16>
    %cst_80 = arith.constant 5.000000e-01 : bf16
    %134 = vector.broadcast %cst_80 : bf16 to vector<8x128xbf16>
    %135 = arith.mulf %134, %133 : vector<8x128xbf16>
    %cst_81 = arith.constant 5.000000e-01 : bf16
    %136 = vector.broadcast %cst_81 : bf16 to vector<8x128xbf16>
    %137 = arith.mulf %136, %133 : vector<8x128xbf16>
    %138 = math.tanh %137 : vector<8x128xbf16>
    %cst_82 = arith.constant 1.000000e+00 : bf16
    %139 = vector.broadcast %cst_82 : bf16 to vector<8x128xbf16>
    %140 = arith.addf %139, %138 : vector<8x128xbf16>
    %141 = arith.mulf %135, %140 : vector<8x128xbf16>
    %c0_83 = arith.constant 0 : index
    %c0_84 = arith.constant 0 : index
    %142 = vector.load %arg22[%c0_83, %c0_84] : memref<128x128xbf16, #tpu.memory_space<vmem>>, vector<128x128xbf16>
    %cst_85 = arith.constant dense<0.000000e+00> : vector<8x128xf32>
    %143 = tpu.matmul %141, %142, %cst_85 {dimension_numbers = #tpu.dot_dimension_numbers<[1], [0], [0], [1], [0, 0, 1, 1], [], []>} : vector<8x128xbf16>, vector<128x128xbf16>, vector<8x128xf32> -> vector<8x128xf32>
    %c0_86 = arith.constant 0 : index
    %c0_87 = arith.constant 0 : index
    %144 = vector.load %arg23[%c0_86, %c0_87] : memref<1x128xf32, #tpu.memory_space<vmem>>, vector<1x128xf32>
    %145 = vector.broadcast %144 : vector<1x128xf32> to vector<8x128xf32>
    %146 = arith.addf %143, %145 : vector<8x128xf32>
    %147 = arith.truncf %146 : vector<8x128xf32> to vector<8x128xbf16>
    %cst_88 = arith.constant 5.000000e-01 : bf16
    %148 = vector.broadcast %cst_88 : bf16 to vector<8x128xbf16>
    %149 = arith.mulf %148, %147 : vector<8x128xbf16>
    %cst_89 = arith.constant 5.000000e-01 : bf16
    %150 = vector.broadcast %cst_89 : bf16 to vector<8x128xbf16>
    %151 = arith.mulf %150, %147 : vector<8x128xbf16>
    %152 = math.tanh %151 : vector<8x128xbf16>
    %cst_90 = arith.constant 1.000000e+00 : bf16
    %153 = vector.broadcast %cst_90 : bf16 to vector<8x128xbf16>
    %154 = arith.addf %153, %152 : vector<8x128xbf16>
    %155 = arith.mulf %149, %154 : vector<8x128xbf16>
    %c0_91 = arith.constant 0 : index
    %c0_92 = arith.constant 0 : index
    %156 = vector.load %arg24[%c0_91, %c0_92] : memref<128x128xbf16, #tpu.memory_space<vmem>>, vector<128x128xbf16>
    %cst_93 = arith.constant dense<0.000000e+00> : vector<8x128xf32>
    %157 = tpu.matmul %155, %156, %cst_93 {dimension_numbers = #tpu.dot_dimension_numbers<[1], [0], [0], [1], [0, 0, 1, 1], [], []>} : vector<8x128xbf16>, vector<128x128xbf16>, vector<8x128xf32> -> vector<8x128xf32>
    %c0_94 = arith.constant 0 : index
    %c0_95 = arith.constant 0 : index
    %158 = vector.load %arg25[%c0_94, %c0_95] : memref<1x128xf32, #tpu.memory_space<vmem>>, vector<1x128xf32>
    %159 = vector.broadcast %158 : vector<1x128xf32> to vector<8x128xf32>
    %160 = arith.addf %157, %159 : vector<8x128xf32>
    %161 = arith.truncf %160 : vector<8x128xf32> to vector<8x128xbf16>
    %cst_96 = arith.constant 5.000000e-01 : bf16
    %162 = vector.broadcast %cst_96 : bf16 to vector<8x128xbf16>
    %163 = arith.mulf %162, %161 : vector<8x128xbf16>
    %cst_97 = arith.constant 5.000000e-01 : bf16
    %164 = vector.broadcast %cst_97 : bf16 to vector<8x128xbf16>
    %165 = arith.mulf %164, %161 : vector<8x128xbf16>
    %166 = math.tanh %165 : vector<8x128xbf16>
    %cst_98 = arith.constant 1.000000e+00 : bf16
    %167 = vector.broadcast %cst_98 : bf16 to vector<8x128xbf16>
    %168 = arith.addf %167, %166 : vector<8x128xbf16>
    %169 = arith.mulf %163, %168 : vector<8x128xbf16>
    %c0_99 = arith.constant 0 : index
    %c0_100 = arith.constant 0 : index
    %170 = vector.load %arg26[%c0_99, %c0_100] : memref<128x128xbf16, #tpu.memory_space<vmem>>, vector<128x128xbf16>
    %cst_101 = arith.constant dense<0.000000e+00> : vector<8x128xf32>
    %171 = tpu.matmul %169, %170, %cst_101 {dimension_numbers = #tpu.dot_dimension_numbers<[1], [0], [0], [1], [0, 0, 1, 1], [], []>} : vector<8x128xbf16>, vector<128x128xbf16>, vector<8x128xf32> -> vector<8x128xf32>
    %c0_102 = arith.constant 0 : index
    %c0_103 = arith.constant 0 : index
    %172 = vector.load %arg27[%c0_102, %c0_103] : memref<1x128xf32, #tpu.memory_space<vmem>>, vector<1x128xf32>
    %173 = vector.broadcast %172 : vector<1x128xf32> to vector<8x128xf32>
    %174 = arith.addf %171, %173 : vector<8x128xf32>
    %cst_104 = arith.constant 6.43775177 : f32
    %175 = vector.broadcast %cst_104 : f32 to vector<8x1xf32>
    %176 = arith.mulf %175, %0 : vector<8x1xf32>
    %177 = math.exp %176 : vector<8x1xf32>
    %cst_105 = arith.constant 1.000000e+00 : f32
    %178 = vector.broadcast %cst_105 : f32 to vector<8x1xf32>
    %179 = arith.subf %177, %178 : vector<8x1xf32>
    %cst_106 = arith.constant 0.155333728 : f32
    %180 = vector.broadcast %cst_106 : f32 to vector<8x1xf32>
    %181 = arith.mulf %179, %180 : vector<8x1xf32>
    %182 = math.rsqrt %181 : vector<8x1xf32>
    %183 = vector.broadcast %182 : vector<8x1xf32> to vector<8x128xf32>
    %184 = arith.mulf %174, %183 : vector<8x128xf32>
    %185 = arith.truncf %184 : vector<8x128xf32> to vector<8x128xbf16>
    %c0_107 = arith.constant 0 : index
    %c0_108 = arith.constant 0 : index
    %186 = vector.load %arg28[%c0_107, %c0_108] : memref<8x128xbf16, #tpu.memory_space<vmem>>, vector<8x128xbf16>
    tpu.vector_store %arg28[%c0_107, %c0_108], %185 {strides = array<i32>} : memref<8x128xbf16, #tpu.memory_space<vmem>>, vector<8x128xbf16>,
    return
  }
  func.func @transform_0(%arg0: i32) -> (i32, i32) {
    %c0_i32 = arith.constant 0 : i32
    %c0_i32_0 = arith.constant 0 : i32
    return %arg0, %c0_i32 : i32, i32
  }
  func.func @transform_1(%arg0: i32) -> (i32, i32) {
    %c0_i32 = arith.constant 0 : i32
    %c0_i32_0 = arith.constant 0 : i32
    return %arg0, %c0_i32 : i32, i32
  }
  func.func @transform_2(%arg0: i32) -> (i32, i32) {
    %c0_i32 = arith.constant 0 : i32
    %c0_i32_0 = arith.constant 0 : i32
    return %arg0, %c0_i32 : i32, i32
  }
  func.func @transform_3(%arg0: i32) -> (i32, i32) {
    %c0_i32 = arith.constant 0 : i32
    %c0_i32_0 = arith.constant 0 : i32
    %c0_i32_1 = arith.constant 0 : i32
    return %c0_i32, %c0_i32_0 : i32, i32
  }
  func.func @transform_4(%arg0: i32) -> (i32, i32) {
    %c0_i32 = arith.constant 0 : i32
    %c0_i32_0 = arith.constant 0 : i32
    %c0_i32_1 = arith.constant 0 : i32
    return %c0_i32, %c0_i32_0 : i32, i32
  }
  func.func @transform_5(%arg0: i32) -> (i32, i32) {
    %c0_i32 = arith.constant 0 : i32
    %c0_i32_0 = arith.constant 0 : i32
    %c0_i32_1 = arith.constant 0 : i32
    return %c0_i32, %c0_i32_0 : i32, i32
  }
  func.func @transform_6(%arg0: i32) -> (i32, i32) {
    %c0_i32 = arith.constant 0 : i32
    %c0_i32_0 = arith.constant 0 : i32
    %c0_i32_1 = arith.constant 0 : i32
    return %c0_i32, %c0_i32_0 : i32, i32
  }
  func.func @transform_7(%arg0: i32) -> (i32, i32) {
    %c0_i32 = arith.constant 0 : i32
    %c0_i32_0 = arith.constant 0 : i32
    %c0_i32_1 = arith.constant 0 : i32
    return %c0_i32, %c0_i32_0 : i32, i32
  }
  func.func @transform_8(%arg0: i32) -> (i32, i32) {
    %c0_i32 = arith.constant 0 : i32
    %c0_i32_0 = arith.constant 0 : i32
    %c0_i32_1 = arith.constant 0 : i32
    return %c0_i32, %c0_i32_0 : i32, i32
  }
  func.func @transform_9(%arg0: i32) -> (i32, i32) {
    %c0_i32 = arith.constant 0 : i32
    %c0_i32_0 = arith.constant 0 : i32
    %c0_i32_1 = arith.constant 0 : i32
    return %c0_i32, %c0_i32_0 : i32, i32
  }
  func.func @transform_10(%arg0: i32) -> (i32, i32) {
    %c0_i32 = arith.constant 0 : i32
    %c0_i32_0 = arith.constant 0 : i32
    %c0_i32_1 = arith.constant 0 : i32
    return %c0_i32, %c0_i32_0 : i32, i32
  }
  func.func @transform_11(%arg0: i32) -> (i32, i32) {
    %c0_i32 = arith.constant 0 : i32
    %c0_i32_0 = arith.constant 0 : i32
    %c0_i32_1 = arith.constant 0 : i32
    return %c0_i32, %c0_i32_0 : i32, i32
  }
  func.func @transform_12(%arg0: i32) -> (i32, i32) {
    %c0_i32 = arith.constant 0 : i32
    %c0_i32_0 = arith.constant 0 : i32
    %c0_i32_1 = arith.constant 0 : i32
    return %c0_i32, %c0_i32_0 : i32, i32
  }
  func.func @transform_13(%arg0: i32) -> (i32, i32) {
    %c0_i32 = arith.constant 0 : i32
    %c0_i32_0 = arith.constant 0 : i32
    %c0_i32_1 = arith.constant 0 : i32
    return %c0_i32, %c0_i32_0 : i32, i32
  }
  func.func @transform_14(%arg0: i32) -> (i32, i32) {
    %c0_i32 = arith.constant 0 : i32
    %c0_i32_0 = arith.constant 0 : i32
    %c0_i32_1 = arith.constant 0 : i32
    return %c0_i32, %c0_i32_0 : i32, i32
  }
  func.func @transform_15(%arg0: i32) -> (i32, i32) {
    %c0_i32 = arith.constant 0 : i32
    %c0_i32_0 = arith.constant 0 : i32
    %c0_i32_1 = arith.constant 0 : i32
    return %c0_i32, %c0_i32_0 : i32, i32
  }
  func.func @transform_16(%arg0: i32) -> (i32, i32) {
    %c0_i32 = arith.constant 0 : i32
    %c0_i32_0 = arith.constant 0 : i32
    %c0_i32_1 = arith.constant 0 : i32
    return %c0_i32, %c0_i32_0 : i32, i32
  }
  func.func @transform_17(%arg0: i32) -> (i32, i32) {
    %c0_i32 = arith.constant 0 : i32
    %c0_i32_0 = arith.constant 0 : i32
    %c0_i32_1 = arith.constant 0 : i32
    return %c0_i32, %c0_i32_0 : i32, i32
  }
  func.func @transform_18(%arg0: i32) -> (i32, i32) {
    %c0_i32 = arith.constant 0 : i32
    %c0_i32_0 = arith.constant 0 : i32
    %c0_i32_1 = arith.constant 0 : i32
    return %c0_i32, %c0_i32_0 : i32, i32
  }
  func.func @transform_19(%arg0: i32) -> (i32, i32) {
    %c0_i32 = arith.constant 0 : i32
    %c0_i32_0 = arith.constant 0 : i32
    %c0_i32_1 = arith.constant 0 : i32
    return %c0_i32, %c0_i32_0 : i32, i32
  }
  func.func @transform_20(%arg0: i32) -> (i32, i32) {
    %c0_i32 = arith.constant 0 : i32
    %c0_i32_0 = arith.constant 0 : i32
    %c0_i32_1 = arith.constant 0 : i32
    return %c0_i32, %c0_i32_0 : i32, i32
  }
  func.func @transform_21(%arg0: i32) -> (i32, i32) {
    %c0_i32 = arith.constant 0 : i32
    %c0_i32_0 = arith.constant 0 : i32
    %c0_i32_1 = arith.constant 0 : i32
    return %c0_i32, %c0_i32_0 : i32, i32
  }
  func.func @transform_22(%arg0: i32) -> (i32, i32) {
    %c0_i32 = arith.constant 0 : i32
    %c0_i32_0 = arith.constant 0 : i32
    %c0_i32_1 = arith.constant 0 : i32
    return %c0_i32, %c0_i32_0 : i32, i32
  }
  func.func @transform_23(%arg0: i32) -> (i32, i32) {
    %c0_i32 = arith.constant 0 : i32
    %c0_i32_0 = arith.constant 0 : i32
    %c0_i32_1 = arith.constant 0 : i32
    return %c0_i32, %c0_i32_0 : i32, i32
  }
  func.func @transform_24(%arg0: i32) -> (i32, i32) {
    %c0_i32 = arith.constant 0 : i32
    %c0_i32_0 = arith.constant 0 : i32
    %c0_i32_1 = arith.constant 0 : i32
    return %c0_i32, %c0_i32_0 : i32, i32
  }
  func.func @transform_25(%arg0: i32) -> (i32, i32) {
    %c0_i32 = arith.constant 0 : i32
    %c0_i32_0 = arith.constant 0 : i32
    %c0_i32_1 = arith.constant 0 : i32
    return %c0_i32, %c0_i32_0 : i32, i32
  }
  func.func @transform_26(%arg0: i32) -> (i32, i32) {
    %c0_i32 = arith.constant 0 : i32
    %c0_i32_0 = arith.constant 0 : i32
    %c0_i32_1 = arith.constant 0 : i32
    return %c0_i32, %c0_i32_0 : i32, i32
  }
  func.func @transform_27(%arg0: i32) -> (i32, i32) {
    %c0_i32 = arith.constant 0 : i32
    %c0_i32_0 = arith.constant 0 : i32
    return %arg0, %c0_i32 : i32, i32
  }
}

</mosaic_0001>

<llo_original>
// kernel: forward.1
$region0: #{forward.1}
  #allocation0 [shape = 'u32[]', space=smem, size = 0x4, offset = 0x4, fixed_abs, tag = 'smem constant byte address 0x4 - core index']
  #allocation1 [shape = 'u32[144,128]{1,0:T(1,128)}', space=vmem, size = 0x12000, scoped, tag = 'internal scratch']
  #allocation2 [shape = 'bf16[8,384]{1,0:T(8,128)(2,1)}', space=vmem, size = 0x1800, scoped, tag = 'scratch operand']
  %s0 = inlined_call_operand.vmem [shape: bf16[8,32], index: 0, kind: input, shape index: {}]
  %s1 = inlined_call_operand.vmem [shape: f32[8,1], index: 1, kind: input, shape index: {}]
  %s2 = inlined_call_operand.vmem [shape: f32[8,3], index: 2, kind: input, shape index: {}]
  %s3 = inlined_call_operand.vmem [shape: f32[1,128], index: 3, kind: input, shape index: {}]
  %s4 = inlined_call_operand.vmem [shape: f32[1,128], index: 4, kind: input, shape index: {}]
  %s5 = inlined_call_operand.hbm [shape: bf16[128,128], index: 5, kind: input, shape index: {}]
  %s6 = inlined_call_operand.hbm [shape: f32[1,128], index: 6, kind: input, shape index: {}]
  %s7 = inlined_call_operand.hbm [shape: f32[3,128], index: 7, kind: input, shape index: {}]
  %s8 = inlined_call_operand.hbm [shape: f32[1,128], index: 8, kind: input, shape index: {}]
  %s9 = inlined_call_operand.vmem [shape: bf16[32,128], index: 9, kind: input, shape index: {}]
  %s10 = inlined_call_operand.hbm [shape: f32[1,128], index: 10, kind: input, shape index: {}]
  %s11 = inlined_call_operand.hbm [shape: bf16[384,128], index: 11, kind: input, shape index: {}]
  %s12 = inlined_call_operand.hbm [shape: f32[1,128], index: 12, kind: input, shape index: {}]
  %s13 = inlined_call_operand.hbm [shape: bf16[128,128], index: 13, kind: input, shape index: {}]
  %s14 = inlined_call_operand.hbm [shape: f32[1,128], index: 14, kind: input, shape index: {}]
  %s15 = inlined_call_operand.hbm [shape: bf16[128,128], index: 15, kind: input, shape index: {}]
  %s16 = inlined_call_operand.hbm [shape: f32[1,128], index: 16, kind: input, shape index: {}]
  %s17 = inlined_call_operand.hbm [shape: bf16[128,128], index: 17, kind: input, shape index: {}]
  %s18 = inlined_call_operand.hbm [shape: f32[1,128], index: 18, kind: input, shape index: {}]
  %s19 = inlined_call_operand.hbm [shape: bf16[128,128], index: 19, kind: input, shape index: {}]
  %s20 = inlined_call_operand.hbm [shape: f32[1,128], index: 20, kind: input, shape index: {}]
  %s21 = inlined_call_operand.hbm [shape: bf16[128,128], index: 21, kind: input, shape index: {}]
  %s22 = inlined_call_operand.hbm [shape: f32[1,128], index: 22, kind: input, shape index: {}]
  %s23 = inlined_call_operand.vmem [shape: bf16[128,128], index: 23, kind: input, shape index: {}]
  %s24 = inlined_call_operand.hbm [shape: f32[1,128], index: 24, kind: input, shape index: {}]
  %s25 = inlined_call_operand.vmem [shape: bf16[128,128], index: 25, kind: input, shape index: {}]
  %s26 = inlined_call_operand.hbm [shape: f32[1,128], index: 26, kind: input, shape index: {}]
  %s27 = inlined_call_operand.hbm [shape: bf16[8,128], index: 27, kind: output, shape index: {}]
  %s28 = sld [smem:[#allocation0]]
  $region194: #{forward.1} parent=0
    _
  %s30 = ssub.s32 1, %s28
  %s31 = scalar_select 0, %s30, %s28
  $region1: #{forward.1} parent=0
    #allocation3 [shape = 'u8[32768]{0}', space=vmem, size = 0x8000, scoped, tag = 'input window, operand 5, single buffered']
    #allocation4 [shape = 's32[1]{0}', space=sflag, size = 0x4, scoped, tag = 'scoped memory for forward.1']
    #allocation5 [shape = 's32[1]{0}', space=sflag, size = 0x4, scoped, tag = 'scoped memory for forward.1']
    #allocation6 [shape = 'u8[512]{0}', space=vmem, size = 0x400, scoped, tag = 'input window, operand 6, single buffered']
    #allocation7 [shape = 's32[1]{0}', space=sflag, size = 0x4, scoped, tag = 'scoped memory for forward.1']
    #allocation8 [shape = 'u8[2048]{0}', space=vmem, size = 0x800, scoped, tag = 'input window, operand 7, single buffered']
    #allocation9 [shape = 'u8[512]{0}', space=vmem, size = 0x400, scoped, tag = 'input window, operand 8, single buffered']
    #allocation10 [shape = 's32[1]{0}', space=sflag, size = 0x4, scoped, tag = 'scoped memory for forward.1']
    #allocation11 [shape = 'u8[512]{0}', space=vmem, size = 0x400, scoped, tag = 'input window, operand 10, single buffered']
    #allocation12 [shape = 'u8[98304]{0}', space=vmem, size = 0x18000, scoped, tag = 'input window, operand 11, single buffered']
    #allocation13 [shape = 's32[1]{0}', space=sflag, size = 0x4, scoped, tag = 'scoped memory for forward.1']
    #allocation14 [shape = 'u8[512]{0}', space=vmem, size = 0x400, scoped, tag = 'input window, operand 12, single buffered']
    #allocation15 [shape = 'u8[32768]{0}', space=vmem, size = 0x8000, scoped, tag = 'input window, operand 13, single buffered']
    #allocation16 [shape = 's32[1]{0}', space=sflag, size = 0x4, scoped, tag = 'scoped memory for forward.1']
    #allocation17 [shape = 'u8[512]{0}', space=vmem, size = 0x400, scoped, tag = 'input window, operand 14, single buffered']
    #allocation18 [shape = 'u8[32768]{0}', space=vmem, size = 0x8000, scoped, tag = 'input window, operand 15, single buffered']
    #allocation19 [shape = 's32[1]{0}', space=sflag, size = 0x4, scoped, tag = 'scoped memory for forward.1']
    #allocation20 [shape = 'u8[512]{0}', space=vmem, size = 0x400, scoped, tag = 'input window, operand 16, single buffered']
    #allocation21 [shape = 'u8[32768]{0}', space=vmem, size = 0x8000, scoped, tag = 'input window, operand 17, single buffered']
    #allocation22 [shape = 's32[1]{0}', space=sflag, size = 0x4, scoped, tag = 'scoped memory for forward.1']
    #allocation23 [shape = 'u8[512]{0}', space=vmem, size = 0x400, scoped, tag = 'input window, operand 18, single buffered']
    #allocation24 [shape = 'u8[32768]{0}', space=vmem, size = 0x8000, scoped, tag = 'input window, operand 19, single buffered']
    #allocation25 [shape = 's32[1]{0}', space=sflag, size = 0x4, scoped, tag = 'scoped memory for forward.1']
    #allocation26 [shape = 'u8[512]{0}', space=vmem, size = 0x400, scoped, tag = 'input window, operand 20, single buffered']
    #allocation27 [shape = 'u8[32768]{0}', space=vmem, size = 0x8000, scoped, tag = 'input window, operand 21, single buffered']
    #allocation28 [shape = 's32[1]{0}', space=sflag, size = 0x4, scoped, tag = 'scoped memory for forward.1']
    #allocation29 [shape = 'u8[512]{0}', space=vmem, size = 0x400, scoped, tag = 'input window, operand 22, single buffered']
    #allocation30 [shape = 'u8[512]{0}', space=vmem, size = 0x400, scoped, tag = 'input window, operand 24, single buffered']
    #allocation31 [shape = 's32[1]{0}', space=sflag, size = 0x4, scoped, tag = 'scoped memory for forward.1']
    #allocation32 [shape = 'u8[512]{0}', space=vmem, size = 0x400, scoped, tag = 'input window, operand 26, single buffered']
    #allocation33 [shape = 'u8[2048]{0}', space=vmem, size = 0x800, scoped, tag = 'output window, operand 0, single buffered']
    %32 = vsyncpa [#allocation4], 0
    %33 = vsyncpa [#allocation7], 0
    %34 = vsyncpa [#allocation10], 0
    %35 = vsyncpa [#allocation13], 0
    %36 = vsyncpa [#allocation16], 0
    %37 = vsyncpa [#allocation19], 0
    %38 = vsyncpa [#allocation22], 0
    %39 = vsyncpa [#allocation25], 0
    %40 = vsyncpa [#allocation28], 0
    %41 = vsyncpa [#allocation31], 0
    %42 = vsyncpa [#allocation5], 0
    // Predicated region
    $region2: #{forward.1} parent=1 // pred_check
      _
    $region3: #{forward.1} parent=1 // pred_check_branch
      %44 = sbr.rel (0) target = $region5
    $region4: #{forward.1} parent=1 // pred_region
      _
    $region5: #{forward.1} parent=1 // pred_fallthru
      _
    // Predicated region
    $region6: #{forward.1} parent=1 // pred_check
      _
    $region7: #{forward.1} parent=1 // pred_check_branch
      %46 = sbr.rel (0) target = $region9
    $region8: #{forward.1} parent=1 // pred_region
      _
    $region9: #{forward.1} parent=1 // pred_fallthru
      _
    // Predicated region
    $region10: #{forward.1} parent=1 // pred_check
      _
    $region11: #{forward.1} parent=1 // pred_check_branch
      %48 = sbr.rel (0) target = $region13
    $region12: #{forward.1} parent=1 // pred_region
      _
    $region13: #{forward.1} parent=1 // pred_fallthru
      _
    // Predicated region
    $region14: #{forward.1} parent=1 // pred_check
      _
    $region15: #{forward.1} parent=1 // pred_check_branch
      %50 = sbr.rel (0) target = $region17
    $region16: #{forward.1} parent=1 // pred_region
      _
    $region17: #{forward.1} parent=1 // pred_fallthru
      _
    // Predicated region
    $region18: #{forward.1} parent=1 // pred_check
      _
    $region19: #{forward.1} parent=1 // pred_check_branch
      %52 = sbr.rel (0) target = $region21
    $region20: #{forward.1} parent=1 // pred_region
      _
    $region21: #{forward.1} parent=1 // pred_fallthru
      _
    // Predicated region
    $region22: #{forward.1} parent=1 // pred_check
      _
    $region23: #{forward.1} parent=1 // pred_check_branch
      %54 = sbr.rel (0) target = $region25
    $region24: #{forward.1} parent=1 // pred_region
      %s56 = ssub.s32 1024, 1024
      %57 = vsyncadd [#allocation4], %s56
      %s58 = sshll.u32 [#allocation3], 4
      %s59 = int_to_ptr.vmem [resolvable:$true] %s58
      %64 = dma.hbm_to_vmem [thread:$0]  %s5, 1024, %s59, [#allocation4], 64, 64, 4
    $region25: #{forward.1} parent=1 // pred_fallthru
      _
    // Predicated region
    $region26: #{forward.1} parent=1 // pred_check
      _
    $region27: #{forward.1} parent=1 // pred_check_branch
      %66 = sbr.rel (0) target = $region29
    $region28: #{forward.1} parent=1 // pred_region
      %s68 = ssub.s32 16, 16
      %69 = vsyncadd [#allocation7], %s68
      %s71 = sshll.u32 [#allocation6], 4
      %s72 = int_to_ptr.vmem [resolvable:$true] %s71
      %74 = dma.hbm_to_vmem [thread:$0]  %s6, 16, %s72, [#allocation7]
    $region29: #{forward.1} parent=1 // pred_fallthru
      _
    // Predicated region
    $region30: #{forward.1} parent=1 // pred_check
      _
    $region31: #{forward.1} parent=1 // pred_check_branch
      %76 = sbr.rel (0) target = $region33
    $region32: #{forward.1} parent=1 // pred_region
      %s78 = ssub.s32 64, 64
      %79 = vsyncadd [#allocation7], %s78
      %s81 = sshll.u32 [#allocation8], 4
      %s82 = int_to_ptr.vmem [resolvable:$true] %s81
      %84 = dma.hbm_to_vmem [thread:$0]  %s7, 64, %s82, [#allocation7]
    $region33: #{forward.1} parent=1 // pred_fallthru
      _
    // Predicated region
    $region34: #{forward.1} parent=1 // pred_check
      _
    $region35: #{forward.1} parent=1 // pred_check_branch
      %86 = sbr.rel (0) target = $region37
    $region36: #{forward.1} parent=1 // pred_region
      %s88 = ssub.s32 16, 16
      %89 = vsyncadd [#allocation10], %s88
      %s91 = sshll.u32 [#allocation9], 4
      %s92 = int_to_ptr.vmem [resolvable:$true] %s91
      %94 = dma.hbm_to_vmem [thread:$0]  %s8, 16, %s92, [#allocation10]
    $region37: #{forward.1} parent=1 // pred_fallthru
      _
    // Predicated region
    $region38: #{forward.1} parent=1 // pred_check
      _
    $region39: #{forward.1} parent=1 // pred_check_branch
      %96 = sbr.rel (0) target = $region41
    $region40: #{forward.1} parent=1 // pred_region
      _
    $region41: #{forward.1} parent=1 // pred_fallthru
      _
    // Predicated region
    $region42: #{forward.1} parent=1 // pred_check
      _
    $region43: #{forward.1} parent=1 // pred_check_branch
      %98 = sbr.rel (0) target = $region45
    $region44: #{forward.1} parent=1 // pred_region
      %s100 = ssub.s32 16, 16
      %101 = vsyncadd [#allocation10], %s100
      %s103 = sshll.u32 [#allocation11], 4
      %s104 = int_to_ptr.vmem [resolvable:$true] %s103
      %106 = dma.hbm_to_vmem [thread:$0]  %s10, 16, %s104, [#allocation10]
    $region45: #{forward.1} parent=1 // pred_fallthru
      _
    // Predicated region
    $region46: #{forward.1} parent=1 // pred_check
      _
    $region47: #{forward.1} parent=1 // pred_check_branch
      %108 = sbr.rel (0) target = $region49
    $region48: #{forward.1} parent=1 // pred_region
      %s110 = ssub.s32 3072, 3072
      %111 = vsyncadd [#allocation13], %s110
      %s112 = sshll.u32 [#allocation12], 4
      %s113 = int_to_ptr.vmem [resolvable:$true] %s112
      %118 = dma.hbm_to_vmem [thread:$0]  %s11, 3072, %s113, [#allocation13], 64, 64, 4
    $region49: #{forward.1} parent=1 // pred_fallthru
      _
    // Predicated region
    $region50: #{forward.1} parent=1 // pred_check
      _
    $region51: #{forward.1} parent=1 // pred_check_branch
      %120 = sbr.rel (0) target = $region53
    $region52: #{forward.1} parent=1 // pred_region
      %s122 = ssub.s32 16, 16
      %123 = vsyncadd [#allocation13], %s122
      %s125 = sshll.u32 [#allocation14], 4
      %s126 = int_to_ptr.vmem [resolvable:$true] %s125
      %128 = dma.hbm_to_vmem [thread:$0]  %s12, 16, %s126, [#allocation13]
    $region53: #{forward.1} parent=1 // pred_fallthru
      _
    // Predicated region
    $region54: #{forward.1} parent=1 // pred_check
      _
    $region55: #{forward.1} parent=1 // pred_check_branch
      %130 = sbr.rel (0) target = $region57
    $region56: #{forward.1} parent=1 // pred_region
      %s132 = ssub.s32 1024, 1024
      %133 = vsyncadd [#allocation16], %s132
      %s134 = sshll.u32 [#allocation15], 4
      %s135 = int_to_ptr.vmem [resolvable:$true] %s134
      %140 = dma.hbm_to_vmem [thread:$0]  %s13, 1024, %s135, [#allocation16], 64, 64, 4
    $region57: #{forward.1} parent=1 // pred_fallthru
      _
    // Predicated region
    $region58: #{forward.1} parent=1 // pred_check
      _
    $region59: #{forward.1} parent=1 // pred_check_branch
      %142 = sbr.rel (0) target = $region61
    $region60: #{forward.1} parent=1 // pred_region
      %s144 = ssub.s32 16, 16
      %145 = vsyncadd [#allocation16], %s144
      %s147 = sshll.u32 [#allocation17], 4
      %s148 = int_to_ptr.vmem [resolvable:$true] %s147
      %150 = dma.hbm_to_vmem [thread:$0]  %s14, 16, %s148, [#allocation16]
    $region61: #{forward.1} parent=1 // pred_fallthru
      _
    // Predicated region
    $region62: #{forward.1} parent=1 // pred_check
      _
    $region63: #{forward.1} parent=1 // pred_check_branch
      %152 = sbr.rel (0) target = $region65
    $region64: #{forward.1} parent=1 // pred_region
      %s154 = ssub.s32 1024, 1024
      %155 = vsyncadd [#allocation19], %s154
      %s156 = sshll.u32 [#allocation18], 4
      %s157 = int_to_ptr.vmem [resolvable:$true] %s156
      %162 = dma.hbm_to_vmem [thread:$0]  %s15, 1024, %s157, [#allocation19], 64, 64, 4
    $region65: #{forward.1} parent=1 // pred_fallthru
      _
    // Predicated region
    $region66: #{forward.1} parent=1 // pred_check
      _
    $region67: #{forward.1} parent=1 // pred_check_branch
      %164 = sbr.rel (0) target = $region69
    $region68: #{forward.1} parent=1 // pred_region
      %s166 = ssub.s32 16, 16
      %167 = vsyncadd [#allocation19], %s166
      %s169 = sshll.u32 [#allocation20], 4
      %s170 = int_to_ptr.vmem [resolvable:$true] %s169
      %172 = dma.hbm_to_vmem [thread:$0]  %s16, 16, %s170, [#allocation19]
    $region69: #{forward.1} parent=1 // pred_fallthru
      _
    // Predicated region
    $region70: #{forward.1} parent=1 // pred_check
      _
    $region71: #{forward.1} parent=1 // pred_check_branch
      %174 = sbr.rel (0) target = $region73
    $region72: #{forward.1} parent=1 // pred_region
      %s176 = ssub.s32 1024, 1024
      %177 = vsyncadd [#allocation22], %s176
      %s178 = sshll.u32 [#allocation21], 4
      %s179 = int_to_ptr.vmem [resolvable:$true] %s178
      %184 = dma.hbm_to_vmem [thread:$0]  %s17, 1024, %s179, [#allocation22], 64, 64, 4
    $region73: #{forward.1} parent=1 // pred_fallthru
      _
    // Predicated region
    $region74: #{forward.1} parent=1 // pred_check
      _
    $region75: #{forward.1} parent=1 // pred_check_branch
      %186 = sbr.rel (0) target = $region77
    $region76: #{forward.1} parent=1 // pred_region
      %s188 = ssub.s32 16, 16
      %189 = vsyncadd [#allocation22], %s188
      %s191 = sshll.u32 [#allocation23], 4
      %s192 = int_to_ptr.vmem [resolvable:$true] %s191
      %194 = dma.hbm_to_vmem [thread:$0]  %s18, 16, %s192, [#allocation22]
    $region77: #{forward.1} parent=1 // pred_fallthru
      _
    // Predicated region
    $region78: #{forward.1} parent=1 // pred_check
      _
    $region79: #{forward.1} parent=1 // pred_check_branch
      %196 = sbr.rel (0) target = $region81
    $region80: #{forward.1} parent=1 // pred_region
      %s198 = ssub.s32 1024, 1024
      %199 = vsyncadd [#allocation25], %s198
      %s200 = sshll.u32 [#allocation24], 4
      %s201 = int_to_ptr.vmem [resolvable:$true] %s200
      %206 = dma.hbm_to_vmem [thread:$0]  %s19, 1024, %s201, [#allocation25], 64, 64, 4
    $region81: #{forward.1} parent=1 // pred_fallthru
      _
    // Predicated region
    $region82: #{forward.1} parent=1 // pred_check
      _
    $region83: #{forward.1} parent=1 // pred_check_branch
      %208 = sbr.rel (0) target = $region85
    $region84: #{forward.1} parent=1 // pred_region
      %s210 = ssub.s32 16, 16
      %211 = vsyncadd [#allocation25], %s210
      %s213 = sshll.u32 [#allocation26], 4
      %s214 = int_to_ptr.vmem [resolvable:$true] %s213
      %216 = dma.hbm_to_vmem [thread:$0]  %s20, 16, %s214, [#allocation25]
    $region85: #{forward.1} parent=1 // pred_fallthru
      _
    // Predicated region
    $region86: #{forward.1} parent=1 // pred_check
      _
    $region87: #{forward.1} parent=1 // pred_check_branch
      %218 = sbr.rel (0) target = $region89
    $region88: #{forward.1} parent=1 // pred_region
      %s220 = ssub.s32 1024, 1024
      %221 = vsyncadd [#allocation28], %s220
      %s222 = sshll.u32 [#allocation27], 4
      %s223 = int_to_ptr.vmem [resolvable:$true] %s222
      %228 = dma.hbm_to_vmem [thread:$0]  %s21, 1024, %s223, [#allocation28], 64, 64, 4
    $region89: #{forward.1} parent=1 // pred_fallthru
      _
    // Predicated region
    $region90: #{forward.1} parent=1 // pred_check
      _
    $region91: #{forward.1} parent=1 // pred_check_branch
      %230 = sbr.rel (0) target = $region93
    $region92: #{forward.1} parent=1 // pred_region
      %s232 = ssub.s32 16, 16
      %233 = vsyncadd [#allocation28], %s232
      %s235 = sshll.u32 [#allocation29], 4
      %s236 = int_to_ptr.vmem [resolvable:$true] %s235
      %238 = dma.hbm_to_vmem [thread:$0]  %s22, 16, %s236, [#allocation28]
    $region93: #{forward.1} parent=1 // pred_fallthru
      _
    // Predicated region
    $region94: #{forward.1} parent=1 // pred_check
      _
    $region95: #{forward.1} parent=1 // pred_check_branch
      %240 = sbr.rel (0) target = $region97
    $region96: #{forward.1} parent=1 // pred_region
      _
    $region97: #{forward.1} parent=1 // pred_fallthru
      _
    // Predicated region
    $region98: #{forward.1} parent=1 // pred_check
      _
    $region99: #{forward.1} parent=1 // pred_check_branch
      %242 = sbr.rel (0) target = $region101
    $region100: #{forward.1} parent=1 // pred_region
      %s244 = ssub.s32 16, 16
      %245 = vsyncadd [#allocation31], %s244
      %s247 = sshll.u32 [#allocation30], 4
      %s248 = int_to_ptr.vmem [resolvable:$true] %s247
      %250 = dma.hbm_to_vmem [thread:$0]  %s24, 16, %s248, [#allocation31]
    $region101: #{forward.1} parent=1 // pred_fallthru
      _
    // Predicated region
    $region102: #{forward.1} parent=1 // pred_check
      _
    $region103: #{forward.1} parent=1 // pred_check_branch
      %252 = sbr.rel (0) target = $region105
    $region104: #{forward.1} parent=1 // pred_region
      _
    $region105: #{forward.1} parent=1 // pred_fallthru
      _
    // Predicated region
    $region106: #{forward.1} parent=1 // pred_check
      _
    $region107: #{forward.1} parent=1 // pred_check_branch
      %254 = sbr.rel (0) target = $region109
    $region108: #{forward.1} parent=1 // pred_region
      %s256 = ssub.s32 16, 16
      %257 = vsyncadd [#allocation31], %s256
      %s259 = sshll.u32 [#allocation32], 4
      %s260 = int_to_ptr.vmem [resolvable:$true] %s259
      %262 = dma.hbm_to_vmem [thread:$0]  %s26, 16, %s260, [#allocation31]
    $region109: #{forward.1} parent=1 // pred_fallthru
      _
    // Predicated region
    $region110: #{forward.1} parent=1 // pred_check
      _
    $region111: #{forward.1} parent=1 // pred_check_branch
      %264 = sbr.rel (0) target = $region113
    $region112: #{forward.1} parent=1 // pred_region
      %265 = dma.done [#allocation4], 1024
    $region113: #{forward.1} parent=1 // pred_fallthru
      _
    // Predicated region
    $region114: #{forward.1} parent=1 // pred_check
      _
    $region115: #{forward.1} parent=1 // pred_check_branch
      %267 = sbr.rel (0) target = $region117
    $region116: #{forward.1} parent=1 // pred_region
      %268 = dma.done [#allocation7], 16
    $region117: #{forward.1} parent=1 // pred_fallthru
      _
    // Predicated region
    $region118: #{forward.1} parent=1 // pred_check
      _
    $region119: #{forward.1} parent=1 // pred_check_branch
      %270 = sbr.rel (0) target = $region121
    $region120: #{forward.1} parent=1 // pred_region
      %271 = dma.done [#allocation7], 64
    $region121: #{forward.1} parent=1 // pred_fallthru
      _
    // Predicated region
    $region122: #{forward.1} parent=1 // pred_check
      _
    $region123: #{forward.1} parent=1 // pred_check_branch
      %273 = sbr.rel (0) target = $region125
    $region124: #{forward.1} parent=1 // pred_region
      %274 = dma.done [#allocation10], 16
    $region125: #{forward.1} parent=1 // pred_fallthru
      _
    // Predicated region
    $region126: #{forward.1} parent=1 // pred_check
      _
    $region127: #{forward.1} parent=1 // pred_check_branch
      %276 = sbr.rel (0) target = $region129
    $region128: #{forward.1} parent=1 // pred_region
      %277 = dma.done [#allocation10], 16
    $region129: #{forward.1} parent=1 // pred_fallthru
      _
    // Predicated region
    $region130: #{forward.1} parent=1 // pred_check
      _
    $region131: #{forward.1} parent=1 // pred_check_branch
      %279 = sbr.rel (0) target = $region133
    $region132: #{forward.1} parent=1 // pred_region
      %280 = dma.done [#allocation13], 3072
    $region133: #{forward.1} parent=1 // pred_fallthru
      _
    // Predicated region
    $region134: #{forward.1} parent=1 // pred_check
      _
    $region135: #{forward.1} parent=1 // pred_check_branch
      %282 = sbr.rel (0) target = $region137
    $region136: #{forward.1} parent=1 // pred_region
      %283 = dma.done [#allocation13], 16
    $region137: #{forward.1} parent=1 // pred_fallthru
      _
    // Predicated region
    $region138: #{forward.1} parent=1 // pred_check
      _
    $region139: #{forward.1} parent=1 // pred_check_branch
      %285 = sbr.rel (0) target = $region141
    $region140: #{forward.1} parent=1 // pred_region
      %286 = dma.done [#allocation16], 1024
    $region141: #{forward.1} parent=1 // pred_fallthru
      _
    // Predicated region
    $region142: #{forward.1} parent=1 // pred_check
      _
    $region143: #{forward.1} parent=1 // pred_check_branch
      %288 = sbr.rel (0) target = $region145
    $region144: #{forward.1} parent=1 // pred_region
      %289 = dma.done [#allocation16], 16
    $region145: #{forward.1} parent=1 // pred_fallthru
      _
    // Predicated region
    $region146: #{forward.1} parent=1 // pred_check
      _
    $region147: #{forward.1} parent=1 // pred_check_branch
      %291 = sbr.rel (0) target = $region149
    $region148: #{forward.1} parent=1 // pred_region
      %292 = dma.done [#allocation19], 1024
    $region149: #{forward.1} parent=1 // pred_fallthru
      _
    // Predicated region
    $region150: #{forward.1} parent=1 // pred_check
      _
    $region151: #{forward.1} parent=1 // pred_check_branch
      %294 = sbr.rel (0) target = $region153
    $region152: #{forward.1} parent=1 // pred_region
      %295 = dma.done [#allocation19], 16
    $region153: #{forward.1} parent=1 // pred_fallthru
      _
    // Predicated region
    $region154: #{forward.1} parent=1 // pred_check
      _
    $region155: #{forward.1} parent=1 // pred_check_branch
      %297 = sbr.rel (0) target = $region157
    $region156: #{forward.1} parent=1 // pred_region
      %298 = dma.done [#allocation22], 1024
    $region157: #{forward.1} parent=1 // pred_fallthru
      _
    // Predicated region
    $region158: #{forward.1} parent=1 // pred_check
      _
    $region159: #{forward.1} parent=1 // pred_check_branch
      %300 = sbr.rel (0) target = $region161
    $region160: #{forward.1} parent=1 // pred_region
      %301 = dma.done [#allocation22], 16
    $region161: #{forward.1} parent=1 // pred_fallthru
      _
    // Predicated region
    $region162: #{forward.1} parent=1 // pred_check
      _
    $region163: #{forward.1} parent=1 // pred_check_branch
      %303 = sbr.rel (0) target = $region165
    $region164: #{forward.1} parent=1 // pred_region
      %304 = dma.done [#allocation25], 1024
    $region165: #{forward.1} parent=1 // pred_fallthru
      _
    // Predicated region
    $region166: #{forward.1} parent=1 // pred_check
      _
    $region167: #{forward.1} parent=1 // pred_check_branch
      %306 = sbr.rel (0) target = $region169
    $region168: #{forward.1} parent=1 // pred_region
      %307 = dma.done [#allocation25], 16
    $region169: #{forward.1} parent=1 // pred_fallthru
      _
    // Predicated region
    $region170: #{forward.1} parent=1 // pred_check
      _
    $region171: #{forward.1} parent=1 // pred_check_branch
      %309 = sbr.rel (0) target = $region173
    $region172: #{forward.1} parent=1 // pred_region
      %310 = dma.done [#allocation28], 1024
    $region173: #{forward.1} parent=1 // pred_fallthru
      _
    // Predicated region
    $region174: #{forward.1} parent=1 // pred_check
      _
    $region175: #{forward.1} parent=1 // pred_check_branch
      %312 = sbr.rel (0) target = $region177
    $region176: #{forward.1} parent=1 // pred_region
      %313 = dma.done [#allocation28], 16
    $region177: #{forward.1} parent=1 // pred_fallthru
      _
    // Predicated region
    $region178: #{forward.1} parent=1 // pred_check
      _
    $region179: #{forward.1} parent=1 // pred_check_branch
      %315 = sbr.rel (0) target = $region181
    $region180: #{forward.1} parent=1 // pred_region
      %316 = dma.done [#allocation31], 16
    $region181: #{forward.1} parent=1 // pred_fallthru
      _
    // Predicated region
    $region182: #{forward.1} parent=1 // pred_check
      _
    $region183: #{forward.1} parent=1 // pred_check_branch
      %318 = sbr.rel (0) target = $region185
    $region184: #{forward.1} parent=1 // pred_region
      %319 = dma.done [#allocation31], 16
    $region185: #{forward.1} parent=1 // pred_fallthru
      _
    %v323 = vld [vmem:[%s1] sm:$0xff]
    %v324 = vld [vmem:[%s0] sm:$0xf]
    %v325 = vld [vmem:[%s3] sm:$0x1]
    %327 = vset.pattern.permute.xlu0 0
    %328 = vperm.xlu0 %327, %v323
    %v329 = vpop.permute.xlu0 %328
    %v332 = vlaneseq
    %v333 = vshrl.u32 %v332, 7
    %v334 = vsub.s32 0, %v333
    %v335 = vrot.slane %v325, %v334
    %v337 = vmul.f32 %v329, %v335
    %v338 = vld [vmem:[%s4] sm:$0x1]
    %v340 = vlaneseq
    %v341 = vshrl.u32 %v340, 7
    %v342 = vsub.s32 0, %v341
    %v343 = vrot.slane %v338, %v342
    %v345 = vadd.f32 %v337, %v343
    %v346 = vand.u32 2147483647, %v345
    %vm347 = vcmp.le.f32.partialorder %v346, 0.7853982
    %vm348 = vcmp.lt.s32.totalorder %v345, 0
    %v349 = vand.u32 %v345, 2139095040
    %v350 = vshrl.u32 %v349, 23
    %v351 = vsub.s32 %v350, 127
    %v352 = vand.u32 2147483647, %v345
    %v353 = vand.u32 %v352, 8388607
    %v354 = vor.u32 %v353, 8388608
    %v355 = vsub.s32 0, %v354
    %v356 = vadd.s32 %v351, 1
    %vm357 = vcmp.gt.s32.totalorder %v356, 0
    %v358 = vsel %vm357, %v356, 0
    %v359 = vshrl.u32 %v358, 5
    %v360 = vand.u32 %v358, 31
    %v361 = vsub.s32 32, %v360
    %v362 = vshrl.u32 683565275, %v361
    %v363 = vshll.u32 683565275, %v360
    %v364 = vshrl.u32 2475754826, %v361
    %v365 = vor.u32 %v363, %v364
    %v366 = vshll.u32 2475754826, %v360
    %v367 = vshrl.u32 2131351028, %v361
    %v368 = vor.u32 %v366, %v367
    %v369 = vshll.u32 2131351028, %v360
    %v370 = vshrl.u32 2102212464, %v361
    %v371 = vor.u32 %v369, %v370
    %v372 = vshll.u32 2102212464, %v360
    %v373 = vshrl.u32 920167782, %v361
    %v374 = vor.u32 %v372, %v373
    %v375 = vshll.u32 920167782, %v360
    %v376 = vshrl.u32 1326507024, %v361
    %v377 = vor.u32 %v375, %v376
    %vm378 = vcmp.lt.s32.totalorder %v359, 1
    %vm379 = vcmp.lt.s32.totalorder %v359, 2
    %vm380 = vcmp.lt.s32.totalorder %v359, 3
    %vm381 = vcmp.lt.s32.totalorder %v359, 4
    %v382 = vsel %vm378, %v362, %v365
    %v383 = vsel %vm381, %v371, 2102212464
    %v384 = vsel %vm380, %v368, %v383
    %v385 = vsel %vm379, %v382, %v384
    %v386 = vsel %vm378, %v365, %v368
    %v387 = vsel %vm381, %v374, 920167782
    %v388 = vsel %vm380, %v371, %v387
    %v389 = vsel %vm379, %v386, %v388
    %v390 = vsel %vm378, %v368, %v371
    %v391 = vsel %vm381, %v377, 1326507024
    %v392 = vsel %vm380, %v374, %v391
    %v393 = vsel %vm379, %v390, %v392
    %v394 = vshll.u32 %v354, 8
    %v395 = vmul.u32.u64.compose %v394, %v393
    %v396 = vextract.low.u32 %v395
    %v397 = vextract.high.u32 %v395
    %v398 = vmul.u32.u64.compose %v394, %v389
    %v399 = vextract.low.u32 %v398
    %v400 = vextract.high.u32 %v398
    %v401 = vmul.u32 %v394, %v385
    %v402 = vadd.s32 %v397, %v399
    %vm403 = vc.u32 %v397, %v399
    %v404 = vadd.s32 %v400, 1
    %v405 = vsel %vm403, %v404, %v400
    %v406 = vadd.s32 %v401, %v405
    %v407 = vadd.s32 %v406, 536870912
    %v408 = vshrl.u32 %v407, 30
    %v409 = vshll.u32 %v408, 30
    %v410 = vsub.s32 %v406, %v409
    %vm411 = vcmp.lt.s32.totalorder %v410, 0
    %v412 = vsub.s32 0, %v410
    %v413 = vsel %vm411, %v412, %v410
    %v414 = vclz %v413
    %v415 = vsub.s32 %v414, 2
    %vm416 = vcmp.gt.s32.totalorder 0, %v415
    %v417 = vsel %vm416, 0, %v415
    %v418 = vsub.s32 32, %v417
    %v419 = vshll.u32 %v410, %v417
    %v420 = vshrl.u32 %v402, %v418
    %v421 = vor.u32 %v419, %v420
    %v422 = vsub.s32 4294967266, %v417
    %v423 = vadd.s32 %v422, 127
    %v424 = vshll.u32 %v423, 23
    %v425 = vor.u32 4788187, %v424
    %v426 = vand.u32 2147483647, %v425
    %v428 = vcvt.s32.f32 %v421
    %v429 = vmul.f32 %v428, %v426
    %v430 = vxor.u32 %v429, 2147483648
    %v431 = vsel %vm348, %v430, %v429
    %v432 = vsub.s32 4, %v408
    %v433 = vsel %vm348, %v432, %v408
    %v434 = vsel %vm347, %v345, %v431
    %v435 = vsel %vm347, 0, %v433
    %v436 = vcosq.f32.pop %v434
    %v437 = vsinq.f32.pop %v434
    %vm438 = vweird.f32 %v345
    %v439 = vadd.s32 %v435, 3
    %v440 = vand.u32 %v439, 3
    %vm441 = vcmp.lt.s32.totalorder %v440, 2
    %vm442 = vcmp.eq.s32.totalorder %v440, 0
    %v443 = vxor.u32 %v437, 2147483648
    %v444 = vsel %vm442, %v436, %v443
    %vm445 = vcmp.eq.s32.totalorder %v440, 2
    %v446 = vxor.u32 %v436, 2147483648
    %v447 = vsel %vm445, %v446, %v437
    %v448 = vsel %vm441, %v444, %v447
    %v449 = vsel %vm438, nan, %v448
    %v450 = vpack.c.bf16 %v449, %v449
    %v451 = vld [vmem:[#allocation3] sm:$0xf]
    %v452 = vld [vmem:[#allocation3 + $0x4] sm:$0xf]
    %v453 = vld [vmem:[#allocation3 + $0x8] sm:$0xf]
    %v454 = vld [vmem:[#allocation3 + $0xc] sm:$0xf]
    %v455 = vld [vmem:[#allocation3 + $0x10] sm:$0xf]
    %v456 = vld [vmem:[#allocation3 + $0x14] sm:$0xf]
    %v457 = vld [vmem:[#allocation3 + $0x18] sm:$0xf]
    %v458 = vld [vmem:[#allocation3 + $0x1c] sm:$0xf]
    %v459 = vld [vmem:[#allocation3 + $0x20] sm:$0xf]
    %v460 = vld [vmem:[#allocation3 + $0x24] sm:$0xf]
    %v461 = vld [vmem:[#allocation3 + $0x28] sm:$0xf]
    %v462 = vld [vmem:[#allocation3 + $0x2c] sm:$0xf]
    %v463 = vld [vmem:[#allocation3 + $0x30] sm:$0xf]
    %v464 = vld [vmem:[#allocation3 + $0x34] sm:$0xf]
    %v465 = vld [vmem:[#allocation3 + $0x38] sm:$0xf]
    %v466 = vld [vmem:[#allocation3 + $0x3c] sm:$0xf]
    %v467 = vld [vmem:[#allocation6] sm:$0x1]
    %v469 = vlaneseq
    %v470 = vshrl.u32 %v469, 7
    %v471 = vsub.s32 0, %v470
    %v472 = vrot.slane %v467, %v471
    %v490 = vunpack.c.l.b16 %v451
    %v491 = vunpack.c.l.b16 %v452
    %v492 = vunpack.c.l.b16 %v453
    %v493 = vunpack.c.l.b16 %v454
    %v494 = vunpack.c.l.b16 %v455
    %v495 = vunpack.c.l.b16 %v456
    %v496 = vunpack.c.l.b16 %v457
    %v497 = vunpack.c.l.b16 %v458
    %v498 = vunpack.c.l.b16 %v459
    %v499 = vunpack.c.l.b16 %v460
    %v500 = vunpack.c.l.b16 %v461
    %v501 = vunpack.c.l.b16 %v462
    %v502 = vunpack.c.l.b16 %v463
    %v503 = vunpack.c.l.b16 %v464
    %v504 = vunpack.c.l.b16 %v465
    %v505 = vunpack.c.l.b16 %v466
    %v506 = vpack.c.b16 %v491, %v490
    %v507 = vpack.c.b16 %v493, %v492
    %v508 = vpack.c.b16 %v495, %v494
    %v509 = vpack.c.b16 %v497, %v496
    %v510 = vpack.c.b16 %v499, %v498
    %v511 = vpack.c.b16 %v501, %v500
    %v512 = vpack.c.b16 %v503, %v502
    %v513 = vpack.c.b16 %v505, %v504
    %522 = vmatprep.subr.bf16.mxu0 0
    %523 = vmatpush1.bf16.msra.mxu0 %v506
    %524 = vmatprep.subr.bf16.mxu0 0
    %525 = vmatpush1.bf16.msra.mxu0 %v507
    %526 = vmatprep.subr.bf16.mxu0 0
    %527 = vmatpush1.bf16.msra.mxu0 %v508
    %528 = vmatprep.subr.bf16.mxu0 0
    %529 = vmatpush1.bf16.msra.mxu0 %v509
    %530 = vmatprep.subr.bf16.mxu0 0
    %531 = vmatpush1.bf16.msra.mxu0 %v510
    %532 = vmatprep.subr.bf16.mxu0 0
    %533 = vmatpush1.bf16.msra.mxu0 %v511
    %534 = vmatprep.subr.bf16.mxu0 0
    %535 = vmatpush1.bf16.msra.mxu0 %v512
    %536 = vmatprep.subr.bf16.mxu0 0
    %537 = vmatpush1.bf16.msra.mxu0 %v513
    %538 = vmatprep.subr.bf16.mxu0 0
    %539 = vmatpush1.bf16.msra.mxu0 0
    %540 = vmatprep.subr.bf16.mxu0 0
    %541 = vmatpush1.bf16.msra.mxu0 0
    %542 = vmatprep.subr.bf16.mxu0 0
    %543 = vmatpush1.bf16.msra.mxu0 0
    %544 = vmatprep.subr.bf16.mxu0 0
    %545 = vmatpush1.bf16.msra.mxu0 0
    %546 = vmatprep.subr.bf16.mxu0 0
    %547 = vmatpush1.bf16.msra.mxu0 0
    %548 = vmatprep.subr.bf16.mxu0 0
    %549 = vmatpush1.bf16.msra.mxu0 0
    %550 = vmatprep.subr.bf16.mxu0 0
    %551 = vmatpush1.bf16.msra.mxu0 0
    %552 = vmatprep.subr.bf16.mxu0 0
    %553 = vmatpush1.bf16.msra.mxu0 0
    %554 = vmatprep.mubr.bf16.mxu0 0
    %555 = vmatmul.mubr.bf16.gmra.mrb[0].mxu0 %v450
    %v556 = vpop.f32.mrb[0].mxu0
    %v557 = vadd.f32 %v472, %v556
    %v558 = vpop.f32.mrb[0].mxu0
    %v559 = vpop.f32.mrb[0].mxu0
    %v560 = vpop.f32.mrb[0].mxu0
    %561 = vdwg.mxu0
    %v562 = vpack.c.bf16 %v557, %v557
    %v563 = vmul.bf16 %v562, 1056980736
    %v564 = vtanh.bf16.pop %v563
    %v565 = vadd.bf16 %v564, 1065369472
    %v566 = vmul.bf16 %v563, %v565
    %v567 = vld [vmem:[#allocation9] sm:$0x1]
    %v568 = vld [vmem:[%s2] sm:$0xff]
    %v569 = vld [vmem:[#allocation8] sm:$0x1]
    %571 = vset.pattern.permute.xlu0 0
    %572 = vperm.xlu0 %571, %v568
    %v573 = vpop.permute.xlu0 %572
    %v575 = vlaneseq
    %v576 = vshrl.u32 %v575, 7
    %v577 = vsub.s32 0, %v576
    %v578 = vrot.slane %v569, %v577
    %v579 = vmul.f32 %v573, %v578
    %v581 = vlaneseq
    %v582 = vshrl.u32 %v581, 7
    %v583 = vsub.s32 0, %v582
    %v584 = vrot.slane %v567, %v583
    %v586 = vadd.f32 %v584, %v579
    %v587 = vld [vmem:[#allocation8 + $0x1] sm:$0x1]
    %588 = vset.pattern.permute.xlu0 1
    %589 = vperm.xlu0 %588, %v568
    %v590 = vpop.permute.xlu0 %589
    %v592 = vlaneseq
    %v593 = vshrl.u32 %v592, 7
    %v594 = vsub.s32 0, %v593
    %v595 = vrot.slane %v587, %v594
    %v596 = vmul.f32 %v590, %v595
    %v597 = vadd.f32 %v586, %v596
    %v598 = vld [vmem:[#allocation8 + $0x2] sm:$0x1]
    %599 = vset.pattern.permute.xlu0 2
    %600 = vperm.xlu0 %599, %v568
    %v601 = vpop.permute.xlu0 %600
    %v603 = vlaneseq
    %v604 = vshrl.u32 %v603, 7
    %v605 = vsub.s32 0, %v604
    %v606 = vrot.slane %v598, %v605
    %v607 = vmul.f32 %v601, %v606
    %v608 = vadd.f32 %v597, %v607
    %v609 = vpack.c.bf16 %v608, %v608
    %v610 = vmul.bf16 %v609, 1056980736
    %v611 = vtanh.bf16.pop %v610
    %v612 = vadd.bf16 %v611, 1065369472
    %v613 = vmul.bf16 %v610, %v612
    %v614 = vld [vmem:[%s9] sm:$0xf]
    %v615 = vld [vmem:[%s9 + $0x4] sm:$0xf]
    %v616 = vld [vmem:[%s9 + $0x8] sm:$0xf]
    %v617 = vld [vmem:[%s9 + $0xc] sm:$0xf]
    %v618 = vld [vmem:[#allocation11] sm:$0x1]
    %v620 = vlaneseq
    %v621 = vshrl.u32 %v620, 7
    %v622 = vsub.s32 0, %v621
    %v623 = vrot.slane %v618, %v622
    %v629 = vunpack.c.l.b16 %v614
    %v630 = vunpack.c.l.b16 %v615
    %v631 = vunpack.c.l.b16 %v616
    %v632 = vunpack.c.l.b16 %v617
    %v633 = vpack.c.b16 %v630, %v629
    %v634 = vpack.c.b16 %v632, %v631
    %vm637 = vcmask 261120
    %v639 = vsel %vm637, %v324, 0
    %641 = vmatprep.subr.bf16.mxu0 0
    %642 = vmatpush1.bf16.msra.mxu0 %v633
    %643 = vmatprep.subr.bf16.mxu0 0
    %644 = vmatpush1.bf16.msra.mxu0 %v634
    %645 = vmatprep.subr.bf16.mxu0 0
    %646 = vmatpush1.bf16.msra.mxu0 0
    %647 = vmatprep.subr.bf16.mxu0 0
    %648 = vmatpush1.bf16.msra.mxu0 0
    %649 = vmatprep.subr.bf16.mxu0 0
    %650 = vmatpush1.bf16.msra.mxu0 0
    %651 = vmatprep.subr.bf16.mxu0 0
    %652 = vmatpush1.bf16.msra.mxu0 0
    %653 = vmatprep.subr.bf16.mxu0 0
    %654 = vmatpush1.bf16.msra.mxu0 0
    %655 = vmatprep.subr.bf16.mxu0 0
    %656 = vmatpush1.bf16.msra.mxu0 0
    %657 = vmatprep.subr.bf16.mxu0 0
    %658 = vmatpush1.bf16.msra.mxu0 0
    %659 = vmatprep.subr.bf16.mxu0 0
    %660 = vmatpush1.bf16.msra.mxu0 0
    %661 = vmatprep.subr.bf16.mxu0 0
    %662 = vmatpush1.bf16.msra.mxu0 0
    %663 = vmatprep.subr.bf16.mxu0 0
    %664 = vmatpush1.bf16.msra.mxu0 0
    %665 = vmatprep.subr.bf16.mxu0 0
    %666 = vmatpush1.bf16.msra.mxu0 0
    %667 = vmatprep.subr.bf16.mxu0 0
    %668 = vmatpush1.bf16.msra.mxu0 0
    %669 = vmatprep.subr.bf16.mxu0 0
    %670 = vmatpush1.bf16.msra.mxu0 0
    %671 = vmatprep.subr.bf16.mxu0 0
    %672 = vmatpush1.bf16.msra.mxu0 0
    %673 = vmatprep.mubr.bf16.mxu0 0
    %674 = vmatmul.mubr.bf16.gmra.mrb[0].mxu0 %v639
    %v675 = vpop.f32.mrb[0].mxu0
    %v676 = vadd.f32 %v623, %v675
    %v677 = vpop.f32.mrb[0].mxu0
    %v678 = vpop.f32.mrb[0].mxu0
    %v679 = vpop.f32.mrb[0].mxu0
    %680 = vdwg.mxu0
    %v681 = vpack.c.bf16 %v676, %v676
    %v682 = vmul.bf16 %v681, 1056980736
    %v683 = vtanh.bf16.pop %v682
    %v684 = vadd.bf16 %v683, 1065369472
    %v685 = vmul.bf16 %v682, %v684
    %686 = vst [vmem:[#allocation2] sm:$0xf] %v685
    %687 = vst [vmem:[#allocation2 + $0x4] sm:$0xf] %v566
    %688 = vst [vmem:[#allocation2 + $0x8] sm:$0xf] %v613
    %v689 = vld [vmem:[#allocation2] sm:$0xff]
    %v690 = vld [vmem:[#allocation2 + $0x8] sm:$0xf]
    %v691 = vld [vmem:[#allocation12] sm:$0xf]
    %v692 = vld [vmem:[#allocation12 + $0x4] sm:$0xf]
    %v693 = vld [vmem:[#allocation12 + $0x8] sm:$0xf]
    %v694 = vld [vmem:[#allocation12 + $0xc] sm:$0xf]
    %v695 = vld [vmem:[#allocation12 + $0x10] sm:$0xf]
    %v696 = vld [vmem:[#allocation12 + $0x14] sm:$0xf]
    %v697 = vld [vmem:[#allocation12 + $0x18] sm:$0xf]
    %v698 = vld [vmem:[#allocation12 + $0x1c] sm:$0xf]
    %v699 = vld [vmem:[#allocation12 + $0x20] sm:$0xf]
    %v700 = vld [vmem:[#allocation12 + $0x24] sm:$0xf]
    %v701 = vld [vmem:[#allocation12 + $0x28] sm:$0xf]
    %v702 = vld [vmem:[#allocation12 + $0x2c] sm:$0xf]
    %v703 = vld [vmem:[#allocation12 + $0x30] sm:$0xf]
    %v704 = vld [vmem:[#allocation12 + $0x34] sm:$0xf]
    %v705 = vld [vmem:[#allocation12 + $0x38] sm:$0xf]
    %v706 = vld [vmem:[#allocation12 + $0x3c] sm:$0xf]
    %v707 = vld [vmem:[#allocation12 + $0x40] sm:$0xf]
    %v708 = vld [vmem:[#allocation12 + $0x44] sm:$0xf]
    %v709 = vld [vmem:[#allocation12 + $0x48] sm:$0xf]
    %v710 = vld [vmem:[#allocation12 + $0x4c] sm:$0xf]
    %v711 = vld [vmem:[#allocation12 + $0x50] sm:$0xf]
    %v712 = vld [vmem:[#allocation12 + $0x54] sm:$0xf]
    %v713 = vld [vmem:[#allocation12 + $0x58] sm:$0xf]
    %v714 = vld [vmem:[#allocation12 + $0x5c] sm:$0xf]
    %v715 = vld [vmem:[#allocation12 + $0x60] sm:$0xf]
    %v716 = vld [vmem:[#allocation12 + $0x64] sm:$0xf]
    %v717 = vld [vmem:[#allocation12 + $0x68] sm:$0xf]
    %v718 = vld [vmem:[#allocation12 + $0x6c] sm:$0xf]
    %v719 = vld [vmem:[#allocation12 + $0x70] sm:$0xf]
    %v720 = vld [vmem:[#allocation12 + $0x74] sm:$0xf]
    %v721 = vld [vmem:[#allocation12 + $0x78] sm:$0xf]
    %v722 = vld [vmem:[#allocation12 + $0x7c] sm:$0xf]
    %v723 = vld [vmem:[#allocation12 + $0x80] sm:$0xf]
    %v724 = vld [vmem:[#allocation12 + $0x84] sm:$0xf]
    %v725 = vld [vmem:[#allocation12 + $0x88] sm:$0xf]
    %v726 = vld [vmem:[#allocation12 + $0x8c] sm:$0xf]
    %v727 = vld [vmem:[#allocation12 + $0x90] sm:$0xf]
    %v728 = vld [vmem:[#allocation12 + $0x94] sm:$0xf]
    %v729 = vld [vmem:[#allocation12 + $0x98] sm:$0xf]
    %v730 = vld [vmem:[#allocation12 + $0x9c] sm:$0xf]
    %v731 = vld [vmem:[#allocation12 + $0xa0] sm:$0xf]
    %v732 = vld [vmem:[#allocation12 + $0xa4] sm:$0xf]
    %v733 = vld [vmem:[#allocation12 + $0xa8] sm:$0xf]
    %v734 = vld [vmem:[#allocation12 + $0xac] sm:$0xf]
    %v735 = vld [vmem:[#allocation12 + $0xb0] sm:$0xf]
    %v736 = vld [vmem:[#allocation12 + $0xb4] sm:$0xf]
    %v737 = vld [vmem:[#allocation12 + $0xb8] sm:$0xf]
    %v738 = vld [vmem:[#allocation12 + $0xbc] sm:$0xf]
    %v739 = vld [vmem:[#allocation14] sm:$0x1]
    %v741 = vlaneseq
    %v742 = vshrl.u32 %v741, 7
    %v743 = vsub.s32 0, %v742
    %v744 = vrot.slane %v739, %v743
    %v748 = vunpack.c.l.b16 %v689
    %v749 = vunpack.c.h.b16 %v689
    %v750 = vunpack.c.l.b16 %v690
    %v751 = vpack.c.b16 %v748, %v748
    %v752 = vpack.c.b16 %v749, %v749
    %v753 = vpack.c.b16 %v750, %v750
    %v805 = vunpack.c.l.b16 %v691
    %v806 = vunpack.c.l.b16 %v692
    %v807 = vunpack.c.l.b16 %v693
    %v808 = vunpack.c.l.b16 %v694
    %v809 = vunpack.c.l.b16 %v695
    %v810 = vunpack.c.l.b16 %v696
    %v811 = vunpack.c.l.b16 %v697
    %v812 = vunpack.c.l.b16 %v698
    %v813 = vunpack.c.l.b16 %v699
    %v814 = vunpack.c.l.b16 %v700
    %v815 = vunpack.c.l.b16 %v701
    %v816 = vunpack.c.l.b16 %v702
    %v817 = vunpack.c.l.b16 %v703
    %v818 = vunpack.c.l.b16 %v704
    %v819 = vunpack.c.l.b16 %v705
    %v820 = vunpack.c.l.b16 %v706
    %v821 = vunpack.c.l.b16 %v707
    %v822 = vunpack.c.l.b16 %v708
    %v823 = vunpack.c.l.b16 %v709
    %v824 = vunpack.c.l.b16 %v710
    %v825 = vunpack.c.l.b16 %v711
    %v826 = vunpack.c.l.b16 %v712
    %v827 = vunpack.c.l.b16 %v713
    %v828 = vunpack.c.l.b16 %v714
    %v829 = vunpack.c.l.b16 %v715
    %v830 = vunpack.c.l.b16 %v716
    %v831 = vunpack.c.l.b16 %v717
    %v832 = vunpack.c.l.b16 %v718
    %v833 = vunpack.c.l.b16 %v719
    %v834 = vunpack.c.l.b16 %v720
    %v835 = vunpack.c.l.b16 %v721
    %v836 = vunpack.c.l.b16 %v722
    %v837 = vunpack.c.l.b16 %v723
    %v838 = vunpack.c.l.b16 %v724
    %v839 = vunpack.c.l.b16 %v725
    %v840 = vunpack.c.l.b16 %v726
    %v841 = vunpack.c.l.b16 %v727
    %v842 = vunpack.c.l.b16 %v728
    %v843 = vunpack.c.l.b16 %v729
    %v844 = vunpack.c.l.b16 %v730
    %v845 = vunpack.c.l.b16 %v731
    %v846 = vunpack.c.l.b16 %v732
    %v847 = vunpack.c.l.b16 %v733
    %v848 = vunpack.c.l.b16 %v734
    %v849 = vunpack.c.l.b16 %v735
    %v850 = vunpack.c.l.b16 %v736
    %v851 = vunpack.c.l.b16 %v737
    %v852 = vunpack.c.l.b16 %v738
    %v853 = vpack.c.b16 %v806, %v805
    %v854 = vpack.c.b16 %v808, %v807
    %v855 = vpack.c.b16 %v810, %v809
    %v856 = vpack.c.b16 %v812, %v811
    %v857 = vpack.c.b16 %v814, %v813
    %v858 = vpack.c.b16 %v816, %v815
    %v859 = vpack.c.b16 %v818, %v817
    %v860 = vpack.c.b16 %v820, %v819
    %v861 = vpack.c.b16 %v822, %v821
    %v862 = vpack.c.b16 %v824, %v823
    %v863 = vpack.c.b16 %v826, %v825
    %v864 = vpack.c.b16 %v828, %v827
    %v865 = vpack.c.b16 %v830, %v829
    %v866 = vpack.c.b16 %v832, %v831
    %v867 = vpack.c.b16 %v834, %v833
    %v868 = vpack.c.b16 %v836, %v835
    %v869 = vpack.c.b16 %v838, %v837
    %v870 = vpack.c.b16 %v840, %v839
    %v871 = vpack.c.b16 %v842, %v841
    %v872 = vpack.c.b16 %v844, %v843
    %v873 = vpack.c.b16 %v846, %v845
    %v874 = vpack.c.b16 %v848, %v847
    %v875 = vpack.c.b16 %v850, %v849
    %v876 = vpack.c.b16 %v852, %v851
    %901 = vmatprep.subr.bf16.mxu0 0
    %902 = vmatpush1.bf16.msra.mxu0 %v853
    %903 = vmatprep.subr.bf16.mxu0 0
    %904 = vmatpush1.bf16.msra.mxu0 %v854
    %905 = vmatprep.subr.bf16.mxu0 0
    %906 = vmatpush1.bf16.msra.mxu0 %v855
    %907 = vmatprep.subr.bf16.mxu0 0
    %908 = vmatpush1.bf16.msra.mxu0 %v856
    %909 = vmatprep.subr.bf16.mxu0 0
    %910 = vmatpush1.bf16.msra.mxu0 %v857
    %911 = vmatprep.subr.bf16.mxu0 0
    %912 = vmatpush1.bf16.msra.mxu0 %v858
    %913 = vmatprep.subr.bf16.mxu0 0
    %914 = vmatpush1.bf16.msra.mxu0 %v859
    %915 = vmatprep.subr.bf16.mxu0 0
    %916 = vmatpush1.bf16.msra.mxu0 %v860
    %917 = vmatprep.subr.bf16.mxu0 0
    %918 = vmatpush1.bf16.msra.mxu0 %v861
    %919 = vmatprep.subr.bf16.mxu0 0
    %920 = vmatpush1.bf16.msra.mxu0 %v862
    %921 = vmatprep.subr.bf16.mxu0 0
    %922 = vmatpush1.bf16.msra.mxu0 %v863
    %923 = vmatprep.subr.bf16.mxu0 0
    %924 = vmatpush1.bf16.msra.mxu0 %v864
    %925 = vmatprep.subr.bf16.mxu0 0
    %926 = vmatpush1.bf16.msra.mxu0 %v865
    %927 = vmatprep.subr.bf16.mxu0 0
    %928 = vmatpush1.bf16.msra.mxu0 %v866
    %929 = vmatprep.subr.bf16.mxu0 0
    %930 = vmatpush1.bf16.msra.mxu0 %v867
    %931 = vmatprep.subr.bf16.mxu0 0
    %932 = vmatpush1.bf16.msra.mxu0 %v868
    %933 = vmatprep.mubr.bf16.mxu0 %v752
    %934 = vmatmul.mubr.bf16.gmra.mrb[0].mxu0 %v751
    %v935 = vpop.f32.mrb[0].mxu0
    %v936 = vadd.f32 %v744, %v935
    %v937 = vpop.f32.mrb[0].mxu0
    %v938 = vpop.f32.mrb[0].mxu0
    %v939 = vpop.f32.mrb[0].mxu0
    %940 = vdwg.mxu0
    %941 = vmatprep.subr.bf16.mxu0 0
    %942 = vmatpush1.bf16.msra.mxu0 %v869
    %943 = vmatprep.subr.bf16.mxu0 0
    %944 = vmatpush1.bf16.msra.mxu0 %v870
    %945 = vmatprep.subr.bf16.mxu0 0
    %946 = vmatpush1.bf16.msra.mxu0 %v871
    %947 = vmatprep.subr.bf16.mxu0 0
    %948 = vmatpush1.bf16.msra.mxu0 %v872
    %949 = vmatprep.subr.bf16.mxu0 0
    %950 = vmatpush1.bf16.msra.mxu0 %v873
    %951 = vmatprep.subr.bf16.mxu0 0
    %952 = vmatpush1.bf16.msra.mxu0 %v874
    %953 = vmatprep.subr.bf16.mxu0 0
    %954 = vmatpush1.bf16.msra.mxu0 %v875
    %955 = vmatprep.subr.bf16.mxu0 0
    %956 = vmatpush1.bf16.msra.mxu0 %v876
    %957 = vmatprep.subr.bf16.mxu0 0
    %958 = vmatpush1.bf16.msra.mxu0 0
    %959 = vmatprep.subr.bf16.mxu0 0
    %960 = vmatpush1.bf16.msra.mxu0 0
    %961 = vmatprep.subr.bf16.mxu0 0
    %962 = vmatpush1.bf16.msra.mxu0 0
    %963 = vmatprep.subr.bf16.mxu0 0
    %964 = vmatpush1.bf16.msra.mxu0 0
    %965 = vmatprep.subr.bf16.mxu0 0
    %966 = vmatpush1.bf16.msra.mxu0 0
    %967 = vmatprep.subr.bf16.mxu0 0
    %968 = vmatpush1.bf16.msra.mxu0 0
    %969 = vmatprep.subr.bf16.mxu0 0
    %970 = vmatpush1.bf16.msra.mxu0 0
    %971 = vmatprep.subr.bf16.mxu0 0
    %972 = vmatpush1.bf16.msra.mxu0 0
    %973 = vmatprep.mubr.bf16.mxu0 0
    %974 = vmatmul.mubr.bf16.gmra.mrb[0].mxu0 %v753
    %v975 = vpop.f32.mrb[0].mxu0
    %v976 = vadd.f32 %v936, %v975
    %v977 = vpop.f32.mrb[0].mxu0
    %v978 = vpop.f32.mrb[0].mxu0
    %v979 = vpop.f32.mrb[0].mxu0
    %980 = vdwg.mxu0
    %v981 = vpack.c.bf16 %v976, %v976
    %v982 = vmul.bf16 %v981, 1056980736
    %v983 = vtanh.bf16.pop %v982
    %v984 = vadd.bf16 %v983, 1065369472
    %v985 = vmul.bf16 %v982, %v984
    %v986 = vld [vmem:[#allocation15] sm:$0xf]
    %v987 = vld [vmem:[#allocation15 + $0x4] sm:$0xf]
    %v988 = vld [vmem:[#allocation15 + $0x8] sm:$0xf]
    %v989 = vld [vmem:[#allocation15 + $0xc] sm:$0xf]
    %v990 = vld [vmem:[#allocation15 + $0x10] sm:$0xf]
    %v991 = vld [vmem:[#allocation15 + $0x14] sm:$0xf]
    %v992 = vld [vmem:[#allocation15 + $0x18] sm:$0xf]
    %v993 = vld [vmem:[#allocation15 + $0x1c] sm:$0xf]
    %v994 = vld [vmem:[#allocation15 + $0x20] sm:$0xf]
    %v995 = vld [vmem:[#allocation15 + $0x24] sm:$0xf]
    %v996 = vld [vmem:[#allocation15 + $0x28] sm:$0xf]
    %v997 = vld [vmem:[#allocation15 + $0x2c] sm:$0xf]
    %v998 = vld [vmem:[#allocation15 + $0x30] sm:$0xf]
    %v999 = vld [vmem:[#allocation15 + $0x34] sm:$0xf]
    %v1000 = vld [vmem:[#allocation15 + $0x38] sm:$0xf]
    %v1001 = vld [vmem:[#allocation15 + $0x3c] sm:$0xf]
    %v1002 = vld [vmem:[#allocation17] sm:$0x1]
    %v1004 = vlaneseq
    %v1005 = vshrl.u32 %v1004, 7
    %v1006 = vsub.s32 0, %v1005
    %v1007 = vrot.slane %v1002, %v1006
    %v1025 = vunpack.c.l.b16 %v986
    %v1026 = vunpack.c.l.b16 %v987
    %v1027 = vunpack.c.l.b16 %v988
    %v1028 = vunpack.c.l.b16 %v989
    %v1029 = vunpack.c.l.b16 %v990
    %v1030 = vunpack.c.l.b16 %v991
    %v1031 = vunpack.c.l.b16 %v992
    %v1032 = vunpack.c.l.b16 %v993
    %v1033 = vunpack.c.l.b16 %v994
    %v1034 = vunpack.c.l.b16 %v995
    %v1035 = vunpack.c.l.b16 %v996
    %v1036 = vunpack.c.l.b16 %v997
    %v1037 = vunpack.c.l.b16 %v998
    %v1038 = vunpack.c.l.b16 %v999
    %v1039 = vunpack.c.l.b16 %v1000
    %v1040 = vunpack.c.l.b16 %v1001
    %v1041 = vpack.c.b16 %v1026, %v1025
    %v1042 = vpack.c.b16 %v1028, %v1027
    %v1043 = vpack.c.b16 %v1030, %v1029
    %v1044 = vpack.c.b16 %v1032, %v1031
    %v1045 = vpack.c.b16 %v1034, %v1033
    %v1046 = vpack.c.b16 %v1036, %v1035
    %v1047 = vpack.c.b16 %v1038, %v1037
    %v1048 = vpack.c.b16 %v1040, %v1039
    %1057 = vmatprep.subr.bf16.mxu0 0
    %1058 = vmatpush1.bf16.msra.mxu0 %v1041
    %1059 = vmatprep.subr.bf16.mxu0 0
    %1060 = vmatpush1.bf16.msra.mxu0 %v1042
    %1061 = vmatprep.subr.bf16.mxu0 0
    %1062 = vmatpush1.bf16.msra.mxu0 %v1043
    %1063 = vmatprep.subr.bf16.mxu0 0
    %1064 = vmatpush1.bf16.msra.mxu0 %v1044
    %1065 = vmatprep.subr.bf16.mxu0 0
    %1066 = vmatpush1.bf16.msra.mxu0 %v1045
    %1067 = vmatprep.subr.bf16.mxu0 0
    %1068 = vmatpush1.bf16.msra.mxu0 %v1046
    %1069 = vmatprep.subr.bf16.mxu0 0
    %1070 = vmatpush1.bf16.msra.mxu0 %v1047
    %1071 = vmatprep.subr.bf16.mxu0 0
    %1072 = vmatpush1.bf16.msra.mxu0 %v1048
    %1073 = vmatprep.subr.bf16.mxu0 0
    %1074 = vmatpush1.bf16.msra.mxu0 0
    %1075 = vmatprep.subr.bf16.mxu0 0
    %1076 = vmatpush1.bf16.msra.mxu0 0
    %1077 = vmatprep.subr.bf16.mxu0 0
    %1078 = vmatpush1.bf16.msra.mxu0 0
    %1079 = vmatprep.subr.bf16.mxu0 0
    %1080 = vmatpush1.bf16.msra.mxu0 0
    %1081 = vmatprep.subr.bf16.mxu0 0
    %1082 = vmatpush1.bf16.msra.mxu0 0
    %1083 = vmatprep.subr.bf16.mxu0 0
    %1084 = vmatpush1.bf16.msra.mxu0 0
    %1085 = vmatprep.subr.bf16.mxu0 0
    %1086 = vmatpush1.bf16.msra.mxu0 0
    %1087 = vmatprep.subr.bf16.mxu0 0
    %1088 = vmatpush1.bf16.msra.mxu0 0
    %1089 = vmatprep.mubr.bf16.mxu0 0
    %1090 = vmatmul.mubr.bf16.gmra.mrb[0].mxu0 %v985
    %v1091 = vpop.f32.mrb[0].mxu0
    %v1092 = vadd.f32 %v1007, %v1091
    %v1093 = vpop.f32.mrb[0].mxu0
    %v1094 = vpop.f32.mrb[0].mxu0
    %v1095 = vpop.f32.mrb[0].mxu0
    %1096 = vdwg.mxu0
    %v1097 = vpack.c.bf16 %v1092, %v1092
    %v1098 = vmul.bf16 %v1097, 1056980736
    %v1099 = vtanh.bf16.pop %v1098
    %v1100 = vadd.bf16 %v1099, 1065369472
    %v1101 = vmul.bf16 %v1098, %v1100
    %v1102 = vld [vmem:[#allocation18] sm:$0xf]
    %v1103 = vld [vmem:[#allocation18 + $0x4] sm:$0xf]
    %v1104 = vld [vmem:[#allocation18 + $0x8] sm:$0xf]
    %v1105 = vld [vmem:[#allocation18 + $0xc] sm:$0xf]
    %v1106 = vld [vmem:[#allocation18 + $0x10] sm:$0xf]
    %v1107 = vld [vmem:[#allocation18 + $0x14] sm:$0xf]
    %v1108 = vld [vmem:[#allocation18 + $0x18] sm:$0xf]
    %v1109 = vld [vmem:[#allocation18 + $0x1c] sm:$0xf]
    %v1110 = vld [vmem:[#allocation18 + $0x20] sm:$0xf]
    %v1111 = vld [vmem:[#allocation18 + $0x24] sm:$0xf]
    %v1112 = vld [vmem:[#allocation18 + $0x28] sm:$0xf]
    %v1113 = vld [vmem:[#allocation18 + $0x2c] sm:$0xf]
    %v1114 = vld [vmem:[#allocation18 + $0x30] sm:$0xf]
    %v1115 = vld [vmem:[#allocation18 + $0x34] sm:$0xf]
    %v1116 = vld [vmem:[#allocation18 + $0x38] sm:$0xf]
    %v1117 = vld [vmem:[#allocation18 + $0x3c] sm:$0xf]
    %v1118 = vld [vmem:[#allocation20] sm:$0x1]
    %v1120 = vlaneseq
    %v1121 = vshrl.u32 %v1120, 7
    %v1122 = vsub.s32 0, %v1121
    %v1123 = vrot.slane %v1118, %v1122
    %v1141 = vunpack.c.l.b16 %v1102
    %v1142 = vunpack.c.l.b16 %v1103
    %v1143 = vunpack.c.l.b16 %v1104
    %v1144 = vunpack.c.l.b16 %v1105
    %v1145 = vunpack.c.l.b16 %v1106
    %v1146 = vunpack.c.l.b16 %v1107
    %v1147 = vunpack.c.l.b16 %v1108
    %v1148 = vunpack.c.l.b16 %v1109
    %v1149 = vunpack.c.l.b16 %v1110
    %v1150 = vunpack.c.l.b16 %v1111
    %v1151 = vunpack.c.l.b16 %v1112
    %v1152 = vunpack.c.l.b16 %v1113
    %v1153 = vunpack.c.l.b16 %v1114
    %v1154 = vunpack.c.l.b16 %v1115
    %v1155 = vunpack.c.l.b16 %v1116
    %v1156 = vunpack.c.l.b16 %v1117
    %v1157 = vpack.c.b16 %v1142, %v1141
    %v1158 = vpack.c.b16 %v1144, %v1143
    %v1159 = vpack.c.b16 %v1146, %v1145
    %v1160 = vpack.c.b16 %v1148, %v1147
    %v1161 = vpack.c.b16 %v1150, %v1149
    %v1162 = vpack.c.b16 %v1152, %v1151
    %v1163 = vpack.c.b16 %v1154, %v1153
    %v1164 = vpack.c.b16 %v1156, %v1155
    %1173 = vmatprep.subr.bf16.mxu0 0
    %1174 = vmatpush1.bf16.msra.mxu0 %v1157
    %1175 = vmatprep.subr.bf16.mxu0 0
    %1176 = vmatpush1.bf16.msra.mxu0 %v1158
    %1177 = vmatprep.subr.bf16.mxu0 0
    %1178 = vmatpush1.bf16.msra.mxu0 %v1159
    %1179 = vmatprep.subr.bf16.mxu0 0
    %1180 = vmatpush1.bf16.msra.mxu0 %v1160
    %1181 = vmatprep.subr.bf16.mxu0 0
    %1182 = vmatpush1.bf16.msra.mxu0 %v1161
    %1183 = vmatprep.subr.bf16.mxu0 0
    %1184 = vmatpush1.bf16.msra.mxu0 %v1162
    %1185 = vmatprep.subr.bf16.mxu0 0
    %1186 = vmatpush1.bf16.msra.mxu0 %v1163
    %1187 = vmatprep.subr.bf16.mxu0 0
    %1188 = vmatpush1.bf16.msra.mxu0 %v1164
    %1189 = vmatprep.subr.bf16.mxu0 0
    %1190 = vmatpush1.bf16.msra.mxu0 0
    %1191 = vmatprep.subr.bf16.mxu0 0
    %1192 = vmatpush1.bf16.msra.mxu0 0
    %1193 = vmatprep.subr.bf16.mxu0 0
    %1194 = vmatpush1.bf16.msra.mxu0 0
    %1195 = vmatprep.subr.bf16.mxu0 0
    %1196 = vmatpush1.bf16.msra.mxu0 0
    %1197 = vmatprep.subr.bf16.mxu0 0
    %1198 = vmatpush1.bf16.msra.mxu0 0
    %1199 = vmatprep.subr.bf16.mxu0 0
    %1200 = vmatpush1.bf16.msra.mxu0 0
    %1201 = vmatprep.subr.bf16.mxu0 0
    %1202 = vmatpush1.bf16.msra.mxu0 0
    %1203 = vmatprep.subr.bf16.mxu0 0
    %1204 = vmatpush1.bf16.msra.mxu0 0
    %1205 = vmatprep.mubr.bf16.mxu0 0
    %1206 = vmatmul.mubr.bf16.gmra.mrb[0].mxu0 %v1101
    %v1207 = vpop.f32.mrb[0].mxu0
    %v1208 = vadd.f32 %v1123, %v1207
    %v1209 = vpop.f32.mrb[0].mxu0
    %v1210 = vpop.f32.mrb[0].mxu0
    %v1211 = vpop.f32.mrb[0].mxu0
    %1212 = vdwg.mxu0
    %v1213 = vpack.c.bf16 %v1208, %v1208
    %v1214 = vmul.bf16 %v1213, 1056980736
    %v1215 = vtanh.bf16.pop %v1214
    %v1216 = vadd.bf16 %v1215, 1065369472
    %v1217 = vmul.bf16 %v1214, %v1216
    %v1218 = vld [vmem:[#allocation21] sm:$0xf]
    %v1219 = vld [vmem:[#allocation21 + $0x4] sm:$0xf]
    %v1220 = vld [vmem:[#allocation21 + $0x8] sm:$0xf]
    %v1221 = vld [vmem:[#allocation21 + $0xc] sm:$0xf]
    %v1222 = vld [vmem:[#allocation21 + $0x10] sm:$0xf]
    %v1223 = vld [vmem:[#allocation21 + $0x14] sm:$0xf]
    %v1224 = vld [vmem:[#allocation21 + $0x18] sm:$0xf]
    %v1225 = vld [vmem:[#allocation21 + $0x1c] sm:$0xf]
    %v1226 = vld [vmem:[#allocation21 + $0x20] sm:$0xf]
    %v1227 = vld [vmem:[#allocation21 + $0x24] sm:$0xf]
    %v1228 = vld [vmem:[#allocation21 + $0x28] sm:$0xf]
    %v1229 = vld [vmem:[#allocation21 + $0x2c] sm:$0xf]
    %v1230 = vld [vmem:[#allocation21 + $0x30] sm:$0xf]
    %v1231 = vld [vmem:[#allocation21 + $0x34] sm:$0xf]
    %v1232 = vld [vmem:[#allocation21 + $0x38] sm:$0xf]
    %v1233 = vld [vmem:[#allocation21 + $0x3c] sm:$0xf]
    %v1234 = vld [vmem:[#allocation23] sm:$0x1]
    %v1236 = vlaneseq
    %v1237 = vshrl.u32 %v1236, 7
    %v1238 = vsub.s32 0, %v1237
    %v1239 = vrot.slane %v1234, %v1238
    %v1257 = vunpack.c.l.b16 %v1218
    %v1258 = vunpack.c.l.b16 %v1219
    %v1259 = vunpack.c.l.b16 %v1220
    %v1260 = vunpack.c.l.b16 %v1221
    %v1261 = vunpack.c.l.b16 %v1222
    %v1262 = vunpack.c.l.b16 %v1223
    %v1263 = vunpack.c.l.b16 %v1224
    %v1264 = vunpack.c.l.b16 %v1225
    %v1265 = vunpack.c.l.b16 %v1226
    %v1266 = vunpack.c.l.b16 %v1227
    %v1267 = vunpack.c.l.b16 %v1228
    %v1268 = vunpack.c.l.b16 %v1229
    %v1269 = vunpack.c.l.b16 %v1230
    %v1270 = vunpack.c.l.b16 %v1231
    %v1271 = vunpack.c.l.b16 %v1232
    %v1272 = vunpack.c.l.b16 %v1233
    %v1273 = vpack.c.b16 %v1258, %v1257
    %v1274 = vpack.c.b16 %v1260, %v1259
    %v1275 = vpack.c.b16 %v1262, %v1261
    %v1276 = vpack.c.b16 %v1264, %v1263
    %v1277 = vpack.c.b16 %v1266, %v1265
    %v1278 = vpack.c.b16 %v1268, %v1267
    %v1279 = vpack.c.b16 %v1270, %v1269
    %v1280 = vpack.c.b16 %v1272, %v1271
    %1289 = vmatprep.subr.bf16.mxu0 0
    %1290 = vmatpush1.bf16.msra.mxu0 %v1273
    %1291 = vmatprep.subr.bf16.mxu0 0
    %1292 = vmatpush1.bf16.msra.mxu0 %v1274
    %1293 = vmatprep.subr.bf16.mxu0 0
    %1294 = vmatpush1.bf16.msra.mxu0 %v1275
    %1295 = vmatprep.subr.bf16.mxu0 0
    %1296 = vmatpush1.bf16.msra.mxu0 %v1276
    %1297 = vmatprep.subr.bf16.mxu0 0
    %1298 = vmatpush1.bf16.msra.mxu0 %v1277
    %1299 = vmatprep.subr.bf16.mxu0 0
    %1300 = vmatpush1.bf16.msra.mxu0 %v1278
    %1301 = vmatprep.subr.bf16.mxu0 0
    %1302 = vmatpush1.bf16.msra.mxu0 %v1279
    %1303 = vmatprep.subr.bf16.mxu0 0
    %1304 = vmatpush1.bf16.msra.mxu0 %v1280
    %1305 = vmatprep.subr.bf16.mxu0 0
    %1306 = vmatpush1.bf16.msra.mxu0 0
    %1307 = vmatprep.subr.bf16.mxu0 0
    %1308 = vmatpush1.bf16.msra.mxu0 0
    %1309 = vmatprep.subr.bf16.mxu0 0
    %1310 = vmatpush1.bf16.msra.mxu0 0
    %1311 = vmatprep.subr.bf16.mxu0 0
    %1312 = vmatpush1.bf16.msra.mxu0 0
    %1313 = vmatprep.subr.bf16.mxu0 0
    %1314 = vmatpush1.bf16.msra.mxu0 0
    %1315 = vmatprep.subr.bf16.mxu0 0
    %1316 = vmatpush1.bf16.msra.mxu0 0
    %1317 = vmatprep.subr.bf16.mxu0 0
    %1318 = vmatpush1.bf16.msra.mxu0 0
    %1319 = vmatprep.subr.bf16.mxu0 0
    %1320 = vmatpush1.bf16.msra.mxu0 0
    %1321 = vmatprep.mubr.bf16.mxu0 0
    %1322 = vmatmul.mubr.bf16.gmra.mrb[0].mxu0 %v1217
    %v1323 = vpop.f32.mrb[0].mxu0
    %v1324 = vadd.f32 %v1239, %v1323
    %v1325 = vpop.f32.mrb[0].mxu0
    %v1326 = vpop.f32.mrb[0].mxu0
    %v1327 = vpop.f32.mrb[0].mxu0
    %1328 = vdwg.mxu0
    %v1329 = vpack.c.bf16 %v1324, %v1324
    %v1330 = vmul.bf16 %v1329, 1056980736
    %v1331 = vtanh.bf16.pop %v1330
    %v1332 = vadd.bf16 %v1331, 1065369472
    %v1333 = vmul.bf16 %v1330, %v1332
    %v1334 = vld [vmem:[#allocation24] sm:$0xf]
    %v1335 = vld [vmem:[#allocation24 + $0x4] sm:$0xf]
    %v1336 = vld [vmem:[#allocation24 + $0x8] sm:$0xf]
    %v1337 = vld [vmem:[#allocation24 + $0xc] sm:$0xf]
    %v1338 = vld [vmem:[#allocation24 + $0x10] sm:$0xf]
    %v1339 = vld [vmem:[#allocation24 + $0x14] sm:$0xf]
    %v1340 = vld [vmem:[#allocation24 + $0x18] sm:$0xf]
    %v1341 = vld [vmem:[#allocation24 + $0x1c] sm:$0xf]
    %v1342 = vld [vmem:[#allocation24 + $0x20] sm:$0xf]
    %v1343 = vld [vmem:[#allocation24 + $0x24] sm:$0xf]
    %v1344 = vld [vmem:[#allocation24 + $0x28] sm:$0xf]
    %v1345 = vld [vmem:[#allocation24 + $0x2c] sm:$0xf]
    %v1346 = vld [vmem:[#allocation24 + $0x30] sm:$0xf]
    %v1347 = vld [vmem:[#allocation24 + $0x34] sm:$0xf]
    %v1348 = vld [vmem:[#allocation24 + $0x38] sm:$0xf]
    %v1349 = vld [vmem:[#allocation24 + $0x3c] sm:$0xf]
    %v1350 = vld [vmem:[#allocation26] sm:$0x1]
    %v1352 = vlaneseq
    %v1353 = vshrl.u32 %v1352, 7
    %v1354 = vsub.s32 0, %v1353
    %v1355 = vrot.slane %v1350, %v1354
    %v1373 = vunpack.c.l.b16 %v1334
    %v1374 = vunpack.c.l.b16 %v1335
    %v1375 = vunpack.c.l.b16 %v1336
    %v1376 = vunpack.c.l.b16 %v1337
    %v1377 = vunpack.c.l.b16 %v1338
    %v1378 = vunpack.c.l.b16 %v1339
    %v1379 = vunpack.c.l.b16 %v1340
    %v1380 = vunpack.c.l.b16 %v1341
    %v1381 = vunpack.c.l.b16 %v1342
    %v1382 = vunpack.c.l.b16 %v1343
    %v1383 = vunpack.c.l.b16 %v1344
    %v1384 = vunpack.c.l.b16 %v1345
    %v1385 = vunpack.c.l.b16 %v1346
    %v1386 = vunpack.c.l.b16 %v1347
    %v1387 = vunpack.c.l.b16 %v1348
    %v1388 = vunpack.c.l.b16 %v1349
    %v1389 = vpack.c.b16 %v1374, %v1373
    %v1390 = vpack.c.b16 %v1376, %v1375
    %v1391 = vpack.c.b16 %v1378, %v1377
    %v1392 = vpack.c.b16 %v1380, %v1379
    %v1393 = vpack.c.b16 %v1382, %v1381
    %v1394 = vpack.c.b16 %v1384, %v1383
    %v1395 = vpack.c.b16 %v1386, %v1385
    %v1396 = vpack.c.b16 %v1388, %v1387
    %1405 = vmatprep.subr.bf16.mxu0 0
    %1406 = vmatpush1.bf16.msra.mxu0 %v1389
    %1407 = vmatprep.subr.bf16.mxu0 0
    %1408 = vmatpush1.bf16.msra.mxu0 %v1390
    %1409 = vmatprep.subr.bf16.mxu0 0
    %1410 = vmatpush1.bf16.msra.mxu0 %v1391
    %1411 = vmatprep.subr.bf16.mxu0 0
    %1412 = vmatpush1.bf16.msra.mxu0 %v1392
    %1413 = vmatprep.subr.bf16.mxu0 0
    %1414 = vmatpush1.bf16.msra.mxu0 %v1393
    %1415 = vmatprep.subr.bf16.mxu0 0
    %1416 = vmatpush1.bf16.msra.mxu0 %v1394
    %1417 = vmatprep.subr.bf16.mxu0 0
    %1418 = vmatpush1.bf16.msra.mxu0 %v1395
    %1419 = vmatprep.subr.bf16.mxu0 0
    %1420 = vmatpush1.bf16.msra.mxu0 %v1396
    %1421 = vmatprep.subr.bf16.mxu0 0
    %1422 = vmatpush1.bf16.msra.mxu0 0
    %1423 = vmatprep.subr.bf16.mxu0 0
    %1424 = vmatpush1.bf16.msra.mxu0 0
    %1425 = vmatprep.subr.bf16.mxu0 0
    %1426 = vmatpush1.bf16.msra.mxu0 0
    %1427 = vmatprep.subr.bf16.mxu0 0
    %1428 = vmatpush1.bf16.msra.mxu0 0
    %1429 = vmatprep.subr.bf16.mxu0 0
    %1430 = vmatpush1.bf16.msra.mxu0 0
    %1431 = vmatprep.subr.bf16.mxu0 0
    %1432 = vmatpush1.bf16.msra.mxu0 0
    %1433 = vmatprep.subr.bf16.mxu0 0
    %1434 = vmatpush1.bf16.msra.mxu0 0
    %1435 = vmatprep.subr.bf16.mxu0 0
    %1436 = vmatpush1.bf16.msra.mxu0 0
    %1437 = vmatprep.mubr.bf16.mxu0 0
    %1438 = vmatmul.mubr.bf16.gmra.mrb[0].mxu0 %v1333
    %v1439 = vpop.f32.mrb[0].mxu0
    %v1440 = vadd.f32 %v1355, %v1439
    %v1441 = vpop.f32.mrb[0].mxu0
    %v1442 = vpop.f32.mrb[0].mxu0
    %v1443 = vpop.f32.mrb[0].mxu0
    %1444 = vdwg.mxu0
    %v1445 = vpack.c.bf16 %v1440, %v1440
    %v1446 = vmul.bf16 %v1445, 1056980736
    %v1447 = vtanh.bf16.pop %v1446
    %v1448 = vadd.bf16 %v1447, 1065369472
    %v1449 = vmul.bf16 %v1446, %v1448
    %v1450 = vld [vmem:[#allocation27] sm:$0xf]
    %v1451 = vld [vmem:[#allocation27 + $0x4] sm:$0xf]
    %v1452 = vld [vmem:[#allocation27 + $0x8] sm:$0xf]
    %v1453 = vld [vmem:[#allocation27 + $0xc] sm:$0xf]
    %v1454 = vld [vmem:[#allocation27 + $0x10] sm:$0xf]
    %v1455 = vld [vmem:[#allocation27 + $0x14] sm:$0xf]
    %v1456 = vld [vmem:[#allocation27 + $0x18] sm:$0xf]
    %v1457 = vld [vmem:[#allocation27 + $0x1c] sm:$0xf]
    %v1458 = vld [vmem:[#allocation27 + $0x20] sm:$0xf]
    %v1459 = vld [vmem:[#allocation27 + $0x24] sm:$0xf]
    %v1460 = vld [vmem:[#allocation27 + $0x28] sm:$0xf]
    %v1461 = vld [vmem:[#allocation27 + $0x2c] sm:$0xf]
    %v1462 = vld [vmem:[#allocation27 + $0x30] sm:$0xf]
    %v1463 = vld [vmem:[#allocation27 + $0x34] sm:$0xf]
    %v1464 = vld [vmem:[#allocation27 + $0x38] sm:$0xf]
    %v1465 = vld [vmem:[#allocation27 + $0x3c] sm:$0xf]
    %v1466 = vld [vmem:[#allocation29] sm:$0x1]
    %v1468 = vlaneseq
    %v1469 = vshrl.u32 %v1468, 7
    %v1470 = vsub.s32 0, %v1469
    %v1471 = vrot.slane %v1466, %v1470
    %v1489 = vunpack.c.l.b16 %v1450
    %v1490 = vunpack.c.l.b16 %v1451
    %v1491 = vunpack.c.l.b16 %v1452
    %v1492 = vunpack.c.l.b16 %v1453
    %v1493 = vunpack.c.l.b16 %v1454
    %v1494 = vunpack.c.l.b16 %v1455
    %v1495 = vunpack.c.l.b16 %v1456
    %v1496 = vunpack.c.l.b16 %v1457
    %v1497 = vunpack.c.l.b16 %v1458
    %v1498 = vunpack.c.l.b16 %v1459
    %v1499 = vunpack.c.l.b16 %v1460
    %v1500 = vunpack.c.l.b16 %v1461
    %v1501 = vunpack.c.l.b16 %v1462
    %v1502 = vunpack.c.l.b16 %v1463
    %v1503 = vunpack.c.l.b16 %v1464
    %v1504 = vunpack.c.l.b16 %v1465
    %v1505 = vpack.c.b16 %v1490, %v1489
    %v1506 = vpack.c.b16 %v1492, %v1491
    %v1507 = vpack.c.b16 %v1494, %v1493
    %v1508 = vpack.c.b16 %v1496, %v1495
    %v1509 = vpack.c.b16 %v1498, %v1497
    %v1510 = vpack.c.b16 %v1500, %v1499
    %v1511 = vpack.c.b16 %v1502, %v1501
    %v1512 = vpack.c.b16 %v1504, %v1503
    %1521 = vmatprep.subr.bf16.mxu0 0
    %1522 = vmatpush1.bf16.msra.mxu0 %v1505
    %1523 = vmatprep.subr.bf16.mxu0 0
    %1524 = vmatpush1.bf16.msra.mxu0 %v1506
    %1525 = vmatprep.subr.bf16.mxu0 0
    %1526 = vmatpush1.bf16.msra.mxu0 %v1507
    %1527 = vmatprep.subr.bf16.mxu0 0
    %1528 = vmatpush1.bf16.msra.mxu0 %v1508
    %1529 = vmatprep.subr.bf16.mxu0 0
    %1530 = vmatpush1.bf16.msra.mxu0 %v1509
    %1531 = vmatprep.subr.bf16.mxu0 0
    %1532 = vmatpush1.bf16.msra.mxu0 %v1510
    %1533 = vmatprep.subr.bf16.mxu0 0
    %1534 = vmatpush1.bf16.msra.mxu0 %v1511
    %1535 = vmatprep.subr.bf16.mxu0 0
    %1536 = vmatpush1.bf16.msra.mxu0 %v1512
    %1537 = vmatprep.subr.bf16.mxu0 0
    %1538 = vmatpush1.bf16.msra.mxu0 0
    %1539 = vmatprep.subr.bf16.mxu0 0
    %1540 = vmatpush1.bf16.msra.mxu0 0
    %1541 = vmatprep.subr.bf16.mxu0 0
    %1542 = vmatpush1.bf16.msra.mxu0 0
    %1543 = vmatprep.subr.bf16.mxu0 0
    %1544 = vmatpush1.bf16.msra.mxu0 0
    %1545 = vmatprep.subr.bf16.mxu0 0
    %1546 = vmatpush1.bf16.msra.mxu0 0
    %1547 = vmatprep.subr.bf16.mxu0 0
    %1548 = vmatpush1.bf16.msra.mxu0 0
    %1549 = vmatprep.subr.bf16.mxu0 0
    %1550 = vmatpush1.bf16.msra.mxu0 0
    %1551 = vmatprep.subr.bf16.mxu0 0
    %1552 = vmatpush1.bf16.msra.mxu0 0
    %1553 = vmatprep.mubr.bf16.mxu0 0
    %1554 = vmatmul.mubr.bf16.gmra.mrb[0].mxu0 %v1449
    %v1555 = vpop.f32.mrb[0].mxu0
    %v1556 = vadd.f32 %v1471, %v1555
    %v1557 = vpop.f32.mrb[0].mxu0
    %v1558 = vpop.f32.mrb[0].mxu0
    %v1559 = vpop.f32.mrb[0].mxu0
    %1560 = vdwg.mxu0
    %v1561 = vpack.c.bf16 %v1556, %v1556
    %v1562 = vmul.bf16 %v1561, 1056980736
    %v1563 = vtanh.bf16.pop %v1562
    %v1564 = vadd.bf16 %v1563, 1065369472
    %v1565 = vmul.bf16 %v1562, %v1564
    %v1566 = vld [vmem:[%s23] sm:$0xf]
    %v1567 = vld [vmem:[%s23 + $0x4] sm:$0xf]
    %v1568 = vld [vmem:[%s23 + $0x8] sm:$0xf]
    %v1569 = vld [vmem:[%s23 + $0xc] sm:$0xf]
    %v1570 = vld [vmem:[%s23 + $0x10] sm:$0xf]
    %v1571 = vld [vmem:[%s23 + $0x14] sm:$0xf]
    %v1572 = vld [vmem:[%s23 + $0x18] sm:$0xf]
    %v1573 = vld [vmem:[%s23 + $0x1c] sm:$0xf]
    %v1574 = vld [vmem:[%s23 + $0x20] sm:$0xf]
    %v1575 = vld [vmem:[%s23 + $0x24] sm:$0xf]
    %v1576 = vld [vmem:[%s23 + $0x28] sm:$0xf]
    %v1577 = vld [vmem:[%s23 + $0x2c] sm:$0xf]
    %v1578 = vld [vmem:[%s23 + $0x30] sm:$0xf]
    %v1579 = vld [vmem:[%s23 + $0x34] sm:$0xf]
    %v1580 = vld [vmem:[%s23 + $0x38] sm:$0xf]
    %v1581 = vld [vmem:[%s23 + $0x3c] sm:$0xf]
    %v1582 = vld [vmem:[#allocation30] sm:$0x1]
    %v1584 = vlaneseq
    %v1585 = vshrl.u32 %v1584, 7
    %v1586 = vsub.s32 0, %v1585
    %v1587 = vrot.slane %v1582, %v1586
    %v1605 = vunpack.c.l.b16 %v1566
    %v1606 = vunpack.c.l.b16 %v1567
    %v1607 = vunpack.c.l.b16 %v1568
    %v1608 = vunpack.c.l.b16 %v1569
    %v1609 = vunpack.c.l.b16 %v1570
    %v1610 = vunpack.c.l.b16 %v1571
    %v1611 = vunpack.c.l.b16 %v1572
    %v1612 = vunpack.c.l.b16 %v1573
    %v1613 = vunpack.c.l.b16 %v1574
    %v1614 = vunpack.c.l.b16 %v1575
    %v1615 = vunpack.c.l.b16 %v1576
    %v1616 = vunpack.c.l.b16 %v1577
    %v1617 = vunpack.c.l.b16 %v1578
    %v1618 = vunpack.c.l.b16 %v1579
    %v1619 = vunpack.c.l.b16 %v1580
    %v1620 = vunpack.c.l.b16 %v1581
    %v1621 = vpack.c.b16 %v1606, %v1605
    %v1622 = vpack.c.b16 %v1608, %v1607
    %v1623 = vpack.c.b16 %v1610, %v1609
    %v1624 = vpack.c.b16 %v1612, %v1611
    %v1625 = vpack.c.b16 %v1614, %v1613
    %v1626 = vpack.c.b16 %v1616, %v1615
    %v1627 = vpack.c.b16 %v1618, %v1617
    %v1628 = vpack.c.b16 %v1620, %v1619
    %1637 = vmatprep.subr.bf16.mxu0 0
    %1638 = vmatpush1.bf16.msra.mxu0 %v1621
    %1639 = vmatprep.subr.bf16.mxu0 0
    %1640 = vmatpush1.bf16.msra.mxu0 %v1622
    %1641 = vmatprep.subr.bf16.mxu0 0
    %1642 = vmatpush1.bf16.msra.mxu0 %v1623
    %1643 = vmatprep.subr.bf16.mxu0 0
    %1644 = vmatpush1.bf16.msra.mxu0 %v1624
    %1645 = vmatprep.subr.bf16.mxu0 0
    %1646 = vmatpush1.bf16.msra.mxu0 %v1625
    %1647 = vmatprep.subr.bf16.mxu0 0
    %1648 = vmatpush1.bf16.msra.mxu0 %v1626
    %1649 = vmatprep.subr.bf16.mxu0 0
    %1650 = vmatpush1.bf16.msra.mxu0 %v1627
    %1651 = vmatprep.subr.bf16.mxu0 0
    %1652 = vmatpush1.bf16.msra.mxu0 %v1628
    %1653 = vmatprep.subr.bf16.mxu0 0
    %1654 = vmatpush1.bf16.msra.mxu0 0
    %1655 = vmatprep.subr.bf16.mxu0 0
    %1656 = vmatpush1.bf16.msra.mxu0 0
    %1657 = vmatprep.subr.bf16.mxu0 0
    %1658 = vmatpush1.bf16.msra.mxu0 0
    %1659 = vmatprep.subr.bf16.mxu0 0
    %1660 = vmatpush1.bf16.msra.mxu0 0
    %1661 = vmatprep.subr.bf16.mxu0 0
    %1662 = vmatpush1.bf16.msra.mxu0 0
    %1663 = vmatprep.subr.bf16.mxu0 0
    %1664 = vmatpush1.bf16.msra.mxu0 0
    %1665 = vmatprep.subr.bf16.mxu0 0
    %1666 = vmatpush1.bf16.msra.mxu0 0
    %1667 = vmatprep.subr.bf16.mxu0 0
    %1668 = vmatpush1.bf16.msra.mxu0 0
    %1669 = vmatprep.mubr.bf16.mxu0 0
    %1670 = vmatmul.mubr.bf16.gmra.mrb[0].mxu0 %v1565
    %v1671 = vpop.f32.mrb[0].mxu0
    %v1672 = vadd.f32 %v1587, %v1671
    %v1673 = vpop.f32.mrb[0].mxu0
    %v1674 = vpop.f32.mrb[0].mxu0
    %v1675 = vpop.f32.mrb[0].mxu0
    %1676 = vdwg.mxu0
    %v1677 = vpack.c.bf16 %v1672, %v1672
    %v1678 = vmul.bf16 %v1677, 1056980736
    %v1679 = vtanh.bf16.pop %v1678
    %v1680 = vadd.bf16 %v1679, 1065369472
    %v1681 = vmul.bf16 %v1678, %v1680
    %v1682 = vld [vmem:[%s25] sm:$0xf]
    %v1683 = vld [vmem:[%s25 + $0x4] sm:$0xf]
    %v1684 = vld [vmem:[%s25 + $0x8] sm:$0xf]
    %v1685 = vld [vmem:[%s25 + $0xc] sm:$0xf]
    %v1686 = vld [vmem:[%s25 + $0x10] sm:$0xf]
    %v1687 = vld [vmem:[%s25 + $0x14] sm:$0xf]
    %v1688 = vld [vmem:[%s25 + $0x18] sm:$0xf]
    %v1689 = vld [vmem:[%s25 + $0x1c] sm:$0xf]
    %v1690 = vld [vmem:[%s25 + $0x20] sm:$0xf]
    %v1691 = vld [vmem:[%s25 + $0x24] sm:$0xf]
    %v1692 = vld [vmem:[%s25 + $0x28] sm:$0xf]
    %v1693 = vld [vmem:[%s25 + $0x2c] sm:$0xf]
    %v1694 = vld [vmem:[%s25 + $0x30] sm:$0xf]
    %v1695 = vld [vmem:[%s25 + $0x34] sm:$0xf]
    %v1696 = vld [vmem:[%s25 + $0x38] sm:$0xf]
    %v1697 = vld [vmem:[%s25 + $0x3c] sm:$0xf]
    %v1698 = vld [vmem:[#allocation32] sm:$0x1]
    %v1700 = vlaneseq
    %v1701 = vshrl.u32 %v1700, 7
    %v1702 = vsub.s32 0, %v1701
    %v1703 = vrot.slane %v1698, %v1702
    %v1721 = vunpack.c.l.b16 %v1682
    %v1722 = vunpack.c.l.b16 %v1683
    %v1723 = vunpack.c.l.b16 %v1684
    %v1724 = vunpack.c.l.b16 %v1685
    %v1725 = vunpack.c.l.b16 %v1686
    %v1726 = vunpack.c.l.b16 %v1687
    %v1727 = vunpack.c.l.b16 %v1688
    %v1728 = vunpack.c.l.b16 %v1689
    %v1729 = vunpack.c.l.b16 %v1690
    %v1730 = vunpack.c.l.b16 %v1691
    %v1731 = vunpack.c.l.b16 %v1692
    %v1732 = vunpack.c.l.b16 %v1693
    %v1733 = vunpack.c.l.b16 %v1694
    %v1734 = vunpack.c.l.b16 %v1695
    %v1735 = vunpack.c.l.b16 %v1696
    %v1736 = vunpack.c.l.b16 %v1697
    %v1737 = vpack.c.b16 %v1722, %v1721
    %v1738 = vpack.c.b16 %v1724, %v1723
    %v1739 = vpack.c.b16 %v1726, %v1725
    %v1740 = vpack.c.b16 %v1728, %v1727
    %v1741 = vpack.c.b16 %v1730, %v1729
    %v1742 = vpack.c.b16 %v1732, %v1731
    %v1743 = vpack.c.b16 %v1734, %v1733
    %v1744 = vpack.c.b16 %v1736, %v1735
    %1753 = vmatprep.subr.bf16.mxu0 0
    %1754 = vmatpush1.bf16.msra.mxu0 %v1737
    %1755 = vmatprep.subr.bf16.mxu0 0
    %1756 = vmatpush1.bf16.msra.mxu0 %v1738
    %1757 = vmatprep.subr.bf16.mxu0 0
    %1758 = vmatpush1.bf16.msra.mxu0 %v1739
    %1759 = vmatprep.subr.bf16.mxu0 0
    %1760 = vmatpush1.bf16.msra.mxu0 %v1740
    %1761 = vmatprep.subr.bf16.mxu0 0
    %1762 = vmatpush1.bf16.msra.mxu0 %v1741
    %1763 = vmatprep.subr.bf16.mxu0 0
    %1764 = vmatpush1.bf16.msra.mxu0 %v1742
    %1765 = vmatprep.subr.bf16.mxu0 0
    %1766 = vmatpush1.bf16.msra.mxu0 %v1743
    %1767 = vmatprep.subr.bf16.mxu0 0
    %1768 = vmatpush1.bf16.msra.mxu0 %v1744
    %1769 = vmatprep.subr.bf16.mxu0 0
    %1770 = vmatpush1.bf16.msra.mxu0 0
    %1771 = vmatprep.subr.bf16.mxu0 0
    %1772 = vmatpush1.bf16.msra.mxu0 0
    %1773 = vmatprep.subr.bf16.mxu0 0
    %1774 = vmatpush1.bf16.msra.mxu0 0
    %1775 = vmatprep.subr.bf16.mxu0 0
    %1776 = vmatpush1.bf16.msra.mxu0 0
    %1777 = vmatprep.subr.bf16.mxu0 0
    %1778 = vmatpush1.bf16.msra.mxu0 0
    %1779 = vmatprep.subr.bf16.mxu0 0
    %1780 = vmatpush1.bf16.msra.mxu0 0
    %1781 = vmatprep.subr.bf16.mxu0 0
    %1782 = vmatpush1.bf16.msra.mxu0 0
    %1783 = vmatprep.subr.bf16.mxu0 0
    %1784 = vmatpush1.bf16.msra.mxu0 0
    %1785 = vmatprep.mubr.bf16.mxu0 0
    %1786 = vmatmul.mubr.bf16.gmra.mrb[0].mxu0 %v1681
    %v1787 = vpop.f32.mrb[0].mxu0
    %v1788 = vadd.f32 %v1703, %v1787
    %v1789 = vpop.f32.mrb[0].mxu0
    %v1790 = vpop.f32.mrb[0].mxu0
    %v1791 = vpop.f32.mrb[0].mxu0
    %1792 = vdwg.mxu0
    %v1793 = vmul.f32 %v323, 6.437752
    %v1794 = vmul.f32 %v1793, 1.442695
    %v1795 = vpow.pop %v1794
    %v1796 = vsub.f32 %v1795, 1.0
    %v1797 = vmul.f32 %v1796, 0.15533373
    %v1798 = vrsqrt.pop %v1797
    %1800 = vset.pattern.permute.xlu0 0
    %1801 = vperm.xlu0 %1800, %v1798
    %v1802 = vpop.permute.xlu0 %1801
    %v1804 = vmul.f32 %v1788, %v1802
    %v1805 = vpack.c.bf16 %v1804, %v1804
    %1806 = vst [vmem:[#allocation33] sm:$0xf] %v1805
    // Predicated region
    $region186: #{forward.1} parent=1 // pred_check
      _
    $region187: #{forward.1} parent=1 // pred_check_branch
      %1808 = sbr.rel (0) target = $region189
    $region188: #{forward.1} parent=1 // pred_region
      %s1810 = ssub.s32 64, 64
      %1811 = vsyncadd [#allocation5], %s1810
      %s1813 = sshll.u32 [#allocation33], 4
      %s1814 = int_to_ptr.vmem [resolvable:$true] %s1813
      %1816 = dma.vmem_to_hbm [thread:$0]  %s1814, 64, %s27, [#allocation5]
    $region189: #{forward.1} parent=1 // pred_fallthru
      _
    // Predicated region
    $region190: #{forward.1} parent=1 // pred_check
      _
    $region191: #{forward.1} parent=1 // pred_check_branch
      %1818 = sbr.rel (0) target = $region193
    $region192: #{forward.1} parent=1 // pred_region
      %1819 = dma.done [#allocation5], 64
    $region193: #{forward.1} parent=1 // pred_fallthru
      _
    %1820 = vsyncpa [#allocation4], 1
    %1821 = vsyncpa [#allocation7], 1
    %1822 = vsyncpa [#allocation10], 1
    %1823 = vsyncpa [#allocation13], 1
    %1824 = vsyncpa [#allocation16], 1
    %1825 = vsyncpa [#allocation19], 1
    %1826 = vsyncpa [#allocation22], 1
    %1827 = vsyncpa [#allocation25], 1
    %1828 = vsyncpa [#allocation28], 1
    %1829 = vsyncpa [#allocation31], 1
    %1830 = vsyncpa [#allocation5], 1

</llo_original>
